<compile_context>
chip_gen: v5e
topology: v5e:2x2
jax: 0.10.0
libtpu: 0.0.40
codegen_flags: <defaults>
</compile_context>

<pallas_src>
import jax
import jax.numpy as jnp
from jax.experimental import pallas as pl
from jax.experimental.pallas import tpu as pltpu

EPS = 1e-5  # PyTorch BatchNorm1d default eps


def generator_kernel(x_ref, w1_ref, w23_ref, w4_ref, p_ref, out_ref):
    """Full Generator forward in one grid-less kernel.

    x_ref   : (N, in_features)            f32   noise (already flattened)
    w1_ref  : (in_features, H)            bf16  layer-1 weight (PyTorch weight.T)
    w23_ref : (2, H, H)                   bf16  layer-2 / layer-3 weights stacked
    w4_ref  : (H, in_features)            bf16  final linear weight
    p_ref   : (7, max(H, in_features))    f32   rows 0..5 = [g1,be1,g2,be2,g3,be3]
                                                (lanes [0:H]); row 6 = final bias
                                                (lanes [0:in_features])
    out_ref : (N, in_features)            f32   tanh output before the NCHW view
    """
    n_inv = 1.0 / x_ref.shape[0]
    H = w1_ref.shape[1]
    F = out_ref.shape[1]

    p = p_ref[...]            # single load of all small f32 parameters
    bn = p[0:6, :H]           # (6, H) BN affine vectors
    b4 = p[6:7, :F]           # (1, F) final linear bias

    def bn_relu(z, g, be):
        # Train-mode BatchNorm1d (biased batch variance), two-pass form for
        # stability. Reductions are XLU sublane sums; scale math is on tiny
        # (1, F) vectors; only 3 full-tensor VPU ops (sub, fma, max) + 1 mul.
        mean = jnp.sum(z, axis=0, keepdims=True) * n_inv
        c = z - mean
        var = jnp.sum(c * c, axis=0, keepdims=True) * n_inv
        scale = g * jax.lax.rsqrt(var + EPS)
        return jnp.maximum(c * scale + be, 0.0)

    # Layer 1: Linear (bias cancelled by BN mean-subtraction) -> BN -> ReLU
    h = x_ref[...].astype(jnp.bfloat16)
    z = jnp.dot(h, w1_ref[...], preferred_element_type=jnp.float32)
    h = bn_relu(z, bn[0:1], bn[1:2]).astype(jnp.bfloat16)

    # Layer 2
    z = jnp.dot(h, w23_ref[0], preferred_element_type=jnp.float32)
    h = bn_relu(z, bn[2:3], bn[3:4]).astype(jnp.bfloat16)

    # Layer 3
    z = jnp.dot(h, w23_ref[1], preferred_element_type=jnp.float32)
    h = bn_relu(z, bn[4:5], bn[5:6]).astype(jnp.bfloat16)

    # Final Linear + Tanh (bias kept: no BN after it)
    z = jnp.dot(h, w4_ref[...], preferred_element_type=jnp.float32) + b4
    out_ref[...] = jnp.tanh(z).astype(out_ref.dtype)


def init_generator_params(key, in_features: int, hidden_units: int):
    """Deterministic init mimicking PyTorch Linear defaults
    (uniform(-1/sqrt(fan_in), 1/sqrt(fan_in))); BN gamma=1, beta=0.

    Returns the packed operand list consumed by the kernel:
        [w1 (bf16), w23 (bf16), w4 (bf16), packed_f32 (7, max(H, in_features))]
    Biases of the three Linear+BN blocks are sampled (for parity with the
    PyTorch parameter set) but intentionally not passed: train-mode BatchNorm
    cancels them exactly.
    """
    layer_dims = [
        (in_features, hidden_units),
        (hidden_units, hidden_units),
        (hidden_units, hidden_units),
        (hidden_units, in_features),
    ]
    weights = []
    biases = []
    for fin, fout in layer_dims:
        key, kw, kb = jax.random.split(key, 3)
        bound = 1.0 / float(fin) ** 0.5
        # Stored directly as (fan_in, fan_out) = PyTorch weight.T
        weights.append(jax.random.uniform(kw, (fin, fout), jnp.float32, -bound, bound))
        biases.append(jax.random.uniform(kb, (fout,), jnp.float32, -bound, bound))

    w1 = weights[0].astype(jnp.bfloat16)                                    # (in, H)
    w23 = jnp.stack([weights[1], weights[2]], axis=0).astype(jnp.bfloat16)  # (2, H, H)
    w4 = weights[3].astype(jnp.bfloat16)                                    # (H, in)

    # One packed f32 buffer for every remaining small parameter:
    #   rows 0,2,4 = gamma (ones), rows 1,3,5 = beta (zeros), row 6 = final bias.
    P = max(hidden_units, in_features)
    packed = jnp.zeros((7, P), jnp.float32)
    g = jnp.ones((hidden_units,), jnp.float32)
    packed = packed.at[0, :hidden_units].set(g)
    packed = packed.at[2, :hidden_units].set(g)
    packed = packed.at[4, :hidden_units].set(g)
    packed = packed.at[6, :in_features].set(biases[3])
    return [w1, w23, w4, packed]


def generator_forward(x, params, out_channels: int, img_size: int,
                      out_dtype=jnp.float32):
    N, in_features = x.shape
    assert in_features == out_channels * img_size * img_size, (
        "in_features must equal out_channels * img_size**2 for the final view")
    hidden_units = params[0].shape[1]

    # Advisory cost estimate so XLA can overlap this small custom call with
    # surrounding work in a larger training graph.
    matmul_flops = 2 * N * (in_features * hidden_units
                            + 2 * hidden_units * hidden_units
                            + hidden_units * in_features)
    weight_bytes = sum(int(p.size) * p.dtype.itemsize for p in params)
    bytes_accessed = (weight_bytes
                      + int(x.size) * x.dtype.itemsize
                      + N * in_features * jnp.dtype(out_dtype).itemsize)
    cost = pl.CostEstimate(flops=matmul_flops,
                           transcendentals=N * in_features,  # tanh
                           bytes_accessed=bytes_accessed)

    vmem_spec = pl.BlockSpec(memory_space=pltpu.MemorySpace.VMEM)
    out_flat = pl.pallas_call(
        generator_kernel,
        out_shape=jax.ShapeDtypeStruct((N, in_features), out_dtype),
        in_specs=[vmem_spec] * (1 + len(params)),
        out_specs=vmem_spec,
        cost_estimate=cost,
    )(x, *params)

    # Equivalent of `.view(N, out_channels, img_size, img_size)` (NCHW)
    return out_flat.reshape(N, out_channels, img_size, img_size)


if __name__ == "__main__":
    # in_features = out_channels * img_size^2; N=256 fills the MXU's M rows
    # on v6e/v7x (and is two clean 128-row passes on v5e) while keeping the
    # whole problem tiny (~0.5 MB of activations).
    N = 256
    out_channels = 1
    img_size = 16
    in_features = out_channels * img_size * img_size   # 256
    hidden_units = 128

    key = jax.random.PRNGKey(0)
    key, kx, kp = jax.random.split(key, 3)

    x = jax.random.normal(kx, (N, in_features), dtype=jnp.float32)
    params = init_generator_params(kp, in_features, hidden_units)

    out = generator_forward(x, params, out_channels, img_size)
    out = jax.block_until_ready(out)

    assert out.shape == (N, out_channels, img_size, img_size), out.shape
    assert bool(jnp.all(jnp.isfinite(out)))
    assert bool(jnp.all(jnp.abs(out) <= 1.0))  # tanh range

    print("KERNEL_OK")
</pallas_src>

<mosaic_0001>
module attributes {stable_mosaic.version = 11 : i64} {
  func.func @generator_kernel(%arg0: memref<256x256xf32, #tpu.memory_space<vmem>>, %arg1: memref<256x128xbf16, #tpu.memory_space<vmem>>, %arg2: memref<2x128x128xbf16, #tpu.memory_space<vmem>>, %arg3: memref<128x256xbf16, #tpu.memory_space<vmem>>, %arg4: memref<7x256xf32, #tpu.memory_space<vmem>>, %arg5: memref<256x256xf32, #tpu.memory_space<vmem>>) attributes {dimension_semantics = [], scalar_prefetch = 0 : i64, scratch_operands = 0 : i64, tpu.core_type = #tpu.core_type<tc>} {
    %c0 = arith.constant 0 : index
    %c0_0 = arith.constant 0 : index
    %0 = vector.load %arg4[%c0, %c0_0] : memref<7x256xf32, #tpu.memory_space<vmem>>, vector<7x256xf32>
    %1 = vector.extract_strided_slice %0 {offsets = [0, 0], sizes = [6, 128], strides = [1, 1]} : vector<7x256xf32> to vector<6x128xf32>
    %2 = vector.extract_strided_slice %0 {offsets = [6, 0], sizes = [1, 256], strides = [1, 1]} : vector<7x256xf32> to vector<1x256xf32>
    %c0_1 = arith.constant 0 : index
    %c0_2 = arith.constant 0 : index
    %3 = vector.load %arg0[%c0_1, %c0_2] : memref<256x256xf32, #tpu.memory_space<vmem>>, vector<256x256xf32>
    %4 = arith.truncf %3 : vector<256x256xf32> to vector<256x256xbf16>
    %c0_3 = arith.constant 0 : index
    %c0_4 = arith.constant 0 : index
    %5 = vector.load %arg1[%c0_3, %c0_4] : memref<256x128xbf16, #tpu.memory_space<vmem>>, vector<256x128xbf16>
    %cst = arith.constant dense<0.000000e+00> : vector<256x128xf32>
    %6 = tpu.matmul %4, %5, %cst {dimension_numbers = #tpu.dot_dimension_numbers<[1], [0], [0], [1], [0, 0, 1, 1], [], []>} : vector<256x256xbf16>, vector<256x128xbf16>, vector<256x128xf32> -> vector<256x128xf32>
    %7 = vector.extract_strided_slice %1 {offsets = [0, 0], sizes = [1, 128], strides = [1, 1]} : vector<6x128xf32> to vector<1x128xf32>
    %8 = vector.extract_strided_slice %1 {offsets = [1, 0], sizes = [1, 128], strides = [1, 1]} : vector<6x128xf32> to vector<1x128xf32>
    %cst_5 = arith.constant dense<0.000000e+00> : vector<128xf32>
    %9 = vector.multi_reduction <add>, %6, %cst_5 [0] : vector<256x128xf32> to vector<128xf32>
    %10 = vector.shape_cast %9 : vector<128xf32> to vector<1x128xf32>
    %cst_6 = arith.constant 3.906250e-03 : f32
    %11 = vector.broadcast %cst_6 : f32 to vector<1x128xf32>
    %12 = arith.mulf %10, %11 : vector<1x128xf32>
    %13 = vector.broadcast %12 : vector<1x128xf32> to vector<256x128xf32>
    %14 = arith.subf %6, %13 : vector<256x128xf32>
    %15 = arith.mulf %14, %14 : vector<256x128xf32>
    %cst_7 = arith.constant dense<0.000000e+00> : vector<128xf32>
    %16 = vector.multi_reduction <add>, %15, %cst_7 [0] : vector<256x128xf32> to vector<128xf32>
    %17 = vector.shape_cast %16 : vector<128xf32> to vector<1x128xf32>
    %cst_8 = arith.constant 3.906250e-03 : f32
    %18 = vector.broadcast %cst_8 : f32 to vector<1x128xf32>
    %19 = arith.mulf %17, %18 : vector<1x128xf32>
    %cst_9 = arith.constant 9.99999974E-6 : f32
    %20 = vector.broadcast %cst_9 : f32 to vector<1x128xf32>
    %21 = arith.addf %19, %20 : vector<1x128xf32>
    %22 = math.rsqrt %21 : vector<1x128xf32>
    %23 = arith.mulf %7, %22 : vector<1x128xf32>
    %24 = vector.broadcast %23 : vector<1x128xf32> to vector<256x128xf32>
    %25 = arith.mulf %14, %24 : vector<256x128xf32>
    %26 = vector.broadcast %8 : vector<1x128xf32> to vector<256x128xf32>
    %27 = arith.addf %25, %26 : vector<256x128xf32>
    %cst_10 = arith.constant 0.000000e+00 : f32
    %28 = vector.broadcast %cst_10 : f32 to vector<256x128xf32>
    %29 = arith.maximumf %27, %28 : vector<256x128xf32>
    %30 = arith.truncf %29 : vector<256x128xf32> to vector<256x128xbf16>
    %c0_11 = arith.constant 0 : index
    %c0_12 = arith.constant 0 : index
    %c0_13 = arith.constant 0 : index
    %31 = vector.load %arg2[%c0_11, %c0_12, %c0_13] : memref<2x128x128xbf16, #tpu.memory_space<vmem>>, vector<1x128x128xbf16>
    %32 = vector.shape_cast %31 : vector<1x128x128xbf16> to vector<128x128xbf16>
    %cst_14 = arith.constant dense<0.000000e+00> : vector<256x128xf32>
    %33 = tpu.matmul %30, %32, %cst_14 {dimension_numbers = #tpu.dot_dimension_numbers<[1], [0], [0], [1], [0, 0, 1, 1], [], []>} : vector<256x128xbf16>, vector<128x128xbf16>, vector<256x128xf32> -> vector<256x128xf32>
    %34 = vector.extract_strided_slice %1 {offsets = [2, 0], sizes = [1, 128], strides = [1, 1]} : vector<6x128xf32> to vector<1x128xf32>
    %35 = vector.extract_strided_slice %1 {offsets = [3, 0], sizes = [1, 128], strides = [1, 1]} : vector<6x128xf32> to vector<1x128xf32>
    %cst_15 = arith.constant dense<0.000000e+00> : vector<128xf32>
    %36 = vector.multi_reduction <add>, %33, %cst_15 [0] : vector<256x128xf32> to vector<128xf32>
    %37 = vector.shape_cast %36 : vector<128xf32> to vector<1x128xf32>
    %cst_16 = arith.constant 3.906250e-03 : f32
    %38 = vector.broadcast %cst_16 : f32 to vector<1x128xf32>
    %39 = arith.mulf %37, %38 : vector<1x128xf32>
    %40 = vector.broadcast %39 : vector<1x128xf32> to vector<256x128xf32>
    %41 = arith.subf %33, %40 : vector<256x128xf32>
    %42 = arith.mulf %41, %41 : vector<256x128xf32>
    %cst_17 = arith.constant dense<0.000000e+00> : vector<128xf32>
    %43 = vector.multi_reduction <add>, %42, %cst_17 [0] : vector<256x128xf32> to vector<128xf32>
    %44 = vector.shape_cast %43 : vector<128xf32> to vector<1x128xf32>
    %cst_18 = arith.constant 3.906250e-03 : f32
    %45 = vector.broadcast %cst_18 : f32 to vector<1x128xf32>
    %46 = arith.mulf %44, %45 : vector<1x128xf32>
    %cst_19 = arith.constant 9.99999974E-6 : f32
    %47 = vector.broadcast %cst_19 : f32 to vector<1x128xf32>
    %48 = arith.addf %46, %47 : vector<1x128xf32>
    %49 = math.rsqrt %48 : vector<1x128xf32>
    %50 = arith.mulf %34, %49 : vector<1x128xf32>
    %51 = vector.broadcast %50 : vector<1x128xf32> to vector<256x128xf32>
    %52 = arith.mulf %41, %51 : vector<256x128xf32>
    %53 = vector.broadcast %35 : vector<1x128xf32> to vector<256x128xf32>
    %54 = arith.addf %52, %53 : vector<256x128xf32>
    %cst_20 = arith.constant 0.000000e+00 : f32
    %55 = vector.broadcast %cst_20 : f32 to vector<256x128xf32>
    %56 = arith.maximumf %54, %55 : vector<256x128xf32>
    %57 = arith.truncf %56 : vector<256x128xf32> to vector<256x128xbf16>
    %c1 = arith.constant 1 : index
    %c0_21 = arith.constant 0 : index
    %c0_22 = arith.constant 0 : index
    %58 = vector.load %arg2[%c1, %c0_21, %c0_22] : memref<2x128x128xbf16, #tpu.memory_space<vmem>>, vector<1x128x128xbf16>
    %59 = vector.shape_cast %58 : vector<1x128x128xbf16> to vector<128x128xbf16>
    %cst_23 = arith.constant dense<0.000000e+00> : vector<256x128xf32>
    %60 = tpu.matmul %57, %59, %cst_23 {dimension_numbers = #tpu.dot_dimension_numbers<[1], [0], [0], [1], [0, 0, 1, 1], [], []>} : vector<256x128xbf16>, vector<128x128xbf16>, vector<256x128xf32> -> vector<256x128xf32>
    %61 = vector.extract_strided_slice %1 {offsets = [4, 0], sizes = [1, 128], strides = [1, 1]} : vector<6x128xf32> to vector<1x128xf32>
    %62 = vector.extract_strided_slice %1 {offsets = [5, 0], sizes = [1, 128], strides = [1, 1]} : vector<6x128xf32> to vector<1x128xf32>
    %cst_24 = arith.constant dense<0.000000e+00> : vector<128xf32>
    %63 = vector.multi_reduction <add>, %60, %cst_24 [0] : vector<256x128xf32> to vector<128xf32>
    %64 = vector.shape_cast %63 : vector<128xf32> to vector<1x128xf32>
    %cst_25 = arith.constant 3.906250e-03 : f32
    %65 = vector.broadcast %cst_25 : f32 to vector<1x128xf32>
    %66 = arith.mulf %64, %65 : vector<1x128xf32>
    %67 = vector.broadcast %66 : vector<1x128xf32> to vector<256x128xf32>
    %68 = arith.subf %60, %67 : vector<256x128xf32>
    %69 = arith.mulf %68, %68 : vector<256x128xf32>
    %cst_26 = arith.constant dense<0.000000e+00> : vector<128xf32>
    %70 = vector.multi_reduction <add>, %69, %cst_26 [0] : vector<256x128xf32> to vector<128xf32>
    %71 = vector.shape_cast %70 : vector<128xf32> to vector<1x128xf32>
    %cst_27 = arith.constant 3.906250e-03 : f32
    %72 = vector.broadcast %cst_27 : f32 to vector<1x128xf32>
    %73 = arith.mulf %71, %72 : vector<1x128xf32>
    %cst_28 = arith.constant 9.99999974E-6 : f32
    %74 = vector.broadcast %cst_28 : f32 to vector<1x128xf32>
    %75 = arith.addf %73, %74 : vector<1x128xf32>
    %76 = math.rsqrt %75 : vector<1x128xf32>
    %77 = arith.mulf %61, %76 : vector<1x128xf32>
    %78 = vector.broadcast %77 : vector<1x128xf32> to vector<256x128xf32>
    %79 = arith.mulf %68, %78 : vector<256x128xf32>
    %80 = vector.broadcast %62 : vector<1x128xf32> to vector<256x128xf32>
    %81 = arith.addf %79, %80 : vector<256x128xf32>
    %cst_29 = arith.constant 0.000000e+00 : f32
    %82 = vector.broadcast %cst_29 : f32 to vector<256x128xf32>
    %83 = arith.maximumf %81, %82 : vector<256x128xf32>
    %84 = arith.truncf %83 : vector<256x128xf32> to vector<256x128xbf16>
    %c0_30 = arith.constant 0 : index
    %c0_31 = arith.constant 0 : index
    %85 = vector.load %arg3[%c0_30, %c0_31] : memref<128x256xbf16, #tpu.memory_space<vmem>>, vector<128x256xbf16>
    %cst_32 = arith.constant dense<0.000000e+00> : vector<256x256xf32>
    %86 = tpu.matmul %84, %85, %cst_32 {dimension_numbers = #tpu.dot_dimension_numbers<[1], [0], [0], [1], [0, 0, 1, 1], [], []>} : vector<256x128xbf16>, vector<128x256xbf16>, vector<256x256xf32> -> vector<256x256xf32>
    %87 = vector.broadcast %2 : vector<1x256xf32> to vector<256x256xf32>
    %88 = arith.addf %86, %87 : vector<256x256xf32>
    %89 = math.tanh %88 : vector<256x256xf32>
    %c0_33 = arith.constant 0 : index
    %c0_34 = arith.constant 0 : index
    %90 = vector.load %arg5[%c0_33, %c0_34] : memref<256x256xf32, #tpu.memory_space<vmem>>, vector<256x256xf32>
    tpu.vector_store %arg5[%c0_33, %c0_34], %89 {strides = array<i32>} : memref<256x256xf32, #tpu.memory_space<vmem>>, vector<256x256xf32>,
    return
  }
}

</mosaic_0001>

<llo_original>
// kernel: tpu_custom_call.1
$region0: #{tpu_custom_call.1}
  #allocation0 [shape = 'u32[]', space=smem, size = 0x4, offset = 0x4, fixed_abs, tag = 'smem constant byte address 0x4 - core index']
  #allocation1 [shape = 'u32[72,128]{1,0:T(1,128)}', space=vmem, size = 0x9000, scoped, tag = 'internal scratch']
  %s0 = inlined_call_operand.hbm [shape: f32[256,256], index: 0, kind: input, shape index: {}]
  %s1 = inlined_call_operand.hbm [shape: bf16[256,128], index: 1, kind: input, shape index: {}]
  %s2 = inlined_call_operand.hbm [shape: bf16[2,128,128], index: 2, kind: input, shape index: {}]
  %s3 = inlined_call_operand.hbm [shape: bf16[128,256], index: 3, kind: input, shape index: {}]
  %s4 = inlined_call_operand.hbm [shape: f32[7,256], index: 4, kind: input, shape index: {}]
  %s5 = inlined_call_operand.hbm [shape: f32[256,256], index: 5, kind: output, shape index: {}]
  %s6 = sld [smem:[#allocation0]]
  $region50: #{tpu_custom_call.1} parent=0
    _
  %s8 = ssub.s32 1, %s6
  %s9 = scalar_select 0, %s8, %s6
  $region1: #{tpu_custom_call.1} parent=0
    #allocation2 [shape = 'u8[262144]{0}', space=vmem, size = 0x40000, scoped, tag = 'input window, operand 0, single buffered']
    #allocation3 [shape = 's32[1]{0}', space=sflag, size = 0x4, scoped, tag = 'scoped memory for tpu_custom_call.1']
    #allocation4 [shape = 's32[1]{0}', space=sflag, size = 0x4, scoped, tag = 'scoped memory for tpu_custom_call.1']
    #allocation5 [shape = 'u8[65536]{0}', space=vmem, size = 0x10000, scoped, tag = 'input window, operand 1, single buffered']
    #allocation6 [shape = 's32[1]{0}', space=sflag, size = 0x4, scoped, tag = 'scoped memory for tpu_custom_call.1']
    #allocation7 [shape = 'u8[65536]{0}', space=vmem, size = 0x10000, scoped, tag = 'input window, operand 2, single buffered']
    #allocation8 [shape = 'u8[65536]{0}', space=vmem, size = 0x10000, scoped, tag = 'input window, operand 3, single buffered']
    #allocation9 [shape = 's32[1]{0}', space=sflag, size = 0x4, scoped, tag = 'scoped memory for tpu_custom_call.1']
    #allocation10 [shape = 'u8[8192]{0}', space=vmem, size = 0x2000, scoped, tag = 'input window, operand 4, single buffered']
    #allocation11 [shape = 'u8[262144]{0}', space=vmem, size = 0x40000, scoped, tag = 'output window, operand 0, single buffered']
    %10 = vsyncpa [#allocation3], 0
    %11 = vsyncpa [#allocation6], 0
    %12 = vsyncpa [#allocation9], 0
    %13 = vsyncpa [#allocation4], 0
    // Predicated region
    $region2: #{tpu_custom_call.1} parent=1 // pred_check
      _
    $region3: #{tpu_custom_call.1} parent=1 // pred_check_branch
      %15 = sbr.rel (0) target = $region5
    $region4: #{tpu_custom_call.1} parent=1 // pred_region
      %17 = vsyncadd [#allocation3], 0
      %s18 = sshll.u32 %s0, 4
      %s19 = int_to_ptr.hbm [resolvable:$true] %s18
      %s20 = sshll.u32 [#allocation2], 4
      %s21 = int_to_ptr.vmem [resolvable:$true] %s20
      %26 = dma.hbm_to_vmem [thread:$0]  %s19, 8192, %s21, [#allocation3], 256, 256, 16
    $region5: #{tpu_custom_call.1} parent=1 // pred_fallthru
      _
    // Predicated region
    $region6: #{tpu_custom_call.1} parent=1 // pred_check
      _
    $region7: #{tpu_custom_call.1} parent=1 // pred_check_branch
      %28 = sbr.rel (0) target = $region9
    $region8: #{tpu_custom_call.1} parent=1 // pred_region
      %30 = vsyncadd [#allocation6], 0
      %s31 = sshll.u32 %s1, 4
      %s32 = int_to_ptr.hbm [resolvable:$true] %s31
      %s33 = sshll.u32 [#allocation5], 4
      %s34 = int_to_ptr.vmem [resolvable:$true] %s33
      %39 = dma.hbm_to_vmem [thread:$0]  %s32, 2048, %s34, [#allocation6], 64, 64, 4
    $region9: #{tpu_custom_call.1} parent=1 // pred_fallthru
      _
    // Predicated region
    $region10: #{tpu_custom_call.1} parent=1 // pred_check
      _
    $region11: #{tpu_custom_call.1} parent=1 // pred_check_branch
      %41 = sbr.rel (0) target = $region13
    $region12: #{tpu_custom_call.1} parent=1 // pred_region
      %43 = vsyncadd [#allocation6], 0
      %s44 = sshll.u32 %s2, 4
      %s45 = int_to_ptr.hbm [resolvable:$true] %s44
      %s46 = sshll.u32 [#allocation7], 4
      %s47 = int_to_ptr.vmem [resolvable:$true] %s46
      %52 = dma.hbm_to_vmem [thread:$0]  %s45, 2048, %s47, [#allocation6], 64, 64, 4
    $region13: #{tpu_custom_call.1} parent=1 // pred_fallthru
      _
    // Predicated region
    $region14: #{tpu_custom_call.1} parent=1 // pred_check
      _
    $region15: #{tpu_custom_call.1} parent=1 // pred_check_branch
      %54 = sbr.rel (0) target = $region17
    $region16: #{tpu_custom_call.1} parent=1 // pred_region
      %56 = vsyncadd [#allocation9], 0
      %s57 = sshll.u32 %s3, 4
      %s58 = int_to_ptr.hbm [resolvable:$true] %s57
      %s59 = sshll.u32 [#allocation8], 4
      %s60 = int_to_ptr.vmem [resolvable:$true] %s59
      %65 = dma.hbm_to_vmem [thread:$0]  %s58, 2048, %s60, [#allocation9], 128, 128, 8
    $region17: #{tpu_custom_call.1} parent=1 // pred_fallthru
      _
    // Predicated region
    $region18: #{tpu_custom_call.1} parent=1 // pred_check
      _
    $region19: #{tpu_custom_call.1} parent=1 // pred_check_branch
      %67 = sbr.rel (0) target = $region21
    $region20: #{tpu_custom_call.1} parent=1 // pred_region
      %69 = vsyncadd [#allocation9], 0
      %s71 = sshll.u32 %s4, 4
      %s72 = int_to_ptr.hbm [resolvable:$true] %s71
      %s73 = sshll.u32 [#allocation10], 4
      %s74 = int_to_ptr.vmem [resolvable:$true] %s73
      %76 = dma.hbm_to_vmem [thread:$0]  %s72, 256, %s74, [#allocation9]
    $region21: #{tpu_custom_call.1} parent=1 // pred_fallthru
      _
    // Predicated region
    $region22: #{tpu_custom_call.1} parent=1 // pred_check
      _
    $region23: #{tpu_custom_call.1} parent=1 // pred_check_branch
      %78 = sbr.rel (0) target = $region25
    $region24: #{tpu_custom_call.1} parent=1 // pred_region
      %80 = dma.done [#allocation3], 8192
    $region25: #{tpu_custom_call.1} parent=1 // pred_fallthru
      _
    // Predicated region
    $region26: #{tpu_custom_call.1} parent=1 // pred_check
      _
    $region27: #{tpu_custom_call.1} parent=1 // pred_check_branch
      %82 = sbr.rel (0) target = $region29
    $region28: #{tpu_custom_call.1} parent=1 // pred_region
      %84 = dma.done [#allocation6], 2048
    $region29: #{tpu_custom_call.1} parent=1 // pred_fallthru
      _
    // Predicated region
    $region30: #{tpu_custom_call.1} parent=1 // pred_check
      _
    $region31: #{tpu_custom_call.1} parent=1 // pred_check_branch
      %86 = sbr.rel (0) target = $region33
    $region32: #{tpu_custom_call.1} parent=1 // pred_region
      %88 = dma.done [#allocation6], 2048
    $region33: #{tpu_custom_call.1} parent=1 // pred_fallthru
      _
    // Predicated region
    $region34: #{tpu_custom_call.1} parent=1 // pred_check
      _
    $region35: #{tpu_custom_call.1} parent=1 // pred_check_branch
      %90 = sbr.rel (0) target = $region37
    $region36: #{tpu_custom_call.1} parent=1 // pred_region
      %92 = dma.done [#allocation9], 2048
    $region37: #{tpu_custom_call.1} parent=1 // pred_fallthru
      _
    // Predicated region
    $region38: #{tpu_custom_call.1} parent=1 // pred_check
      _
    $region39: #{tpu_custom_call.1} parent=1 // pred_check_branch
      %94 = sbr.rel (0) target = $region41
    $region40: #{tpu_custom_call.1} parent=1 // pred_region
      %96 = dma.done [#allocation9], 256
    $region41: #{tpu_custom_call.1} parent=1 // pred_fallthru
      _
    %v97 = vld [vmem:[#allocation10] sm:$0x7f]
    %v98 = vld [vmem:[#allocation10 + $0x8] sm:$0x7f]
    %v99 = vld [vmem:[#allocation2] sm:$0xff]
    %v100 = vld [vmem:[#allocation2 + $0x8] sm:$0xff]
    %v101 = vld [vmem:[#allocation2 + $0x10] sm:$0xff]
    %v102 = vld [vmem:[#allocation2 + $0x18] sm:$0xff]
    %v103 = vld [vmem:[#allocation2 + $0x20] sm:$0xff]
    %v104 = vld [vmem:[#allocation2 + $0x28] sm:$0xff]
    %v105 = vld [vmem:[#allocation2 + $0x30] sm:$0xff]
    %v106 = vld [vmem:[#allocation2 + $0x38] sm:$0xff]
    %v107 = vld [vmem:[#allocation2 + $0x40] sm:$0xff]
    %v108 = vld [vmem:[#allocation2 + $0x48] sm:$0xff]
    %v109 = vld [vmem:[#allocation2 + $0x50] sm:$0xff]
    %v110 = vld [vmem:[#allocation2 + $0x58] sm:$0xff]
    %v111 = vld [vmem:[#allocation2 + $0x60] sm:$0xff]
    %v112 = vld [vmem:[#allocation2 + $0x68] sm:$0xff]
    %v113 = vld [vmem:[#allocation2 + $0x70] sm:$0xff]
    %v114 = vld [vmem:[#allocation2 + $0x78] sm:$0xff]
    %v115 = vld [vmem:[#allocation2 + $0x80] sm:$0xff]
    %v116 = vld [vmem:[#allocation2 + $0x88] sm:$0xff]
    %v117 = vld [vmem:[#allocation2 + $0x90] sm:$0xff]
    %v118 = vld [vmem:[#allocation2 + $0x98] sm:$0xff]
    %v119 = vld [vmem:[#allocation2 + $0xa0] sm:$0xff]
    %v120 = vld [vmem:[#allocation2 + $0xa8] sm:$0xff]
    %v121 = vld [vmem:[#allocation2 + $0xb0] sm:$0xff]
    %v122 = vld [vmem:[#allocation2 + $0xb8] sm:$0xff]
    %v123 = vld [vmem:[#allocation2 + $0xc0] sm:$0xff]
    %v124 = vld [vmem:[#allocation2 + $0xc8] sm:$0xff]
    %v125 = vld [vmem:[#allocation2 + $0xd0] sm:$0xff]
    %v126 = vld [vmem:[#allocation2 + $0xd8] sm:$0xff]
    %v127 = vld [vmem:[#allocation2 + $0xe0] sm:$0xff]
    %v128 = vld [vmem:[#allocation2 + $0xe8] sm:$0xff]
    %v129 = vld [vmem:[#allocation2 + $0xf0] sm:$0xff]
    %v130 = vld [vmem:[#allocation2 + $0xf8] sm:$0xff]
    %v131 = vld [vmem:[#allocation2 + $0x100] sm:$0xff]
    %v132 = vld [vmem:[#allocation2 + $0x108] sm:$0xff]
    %v133 = vld [vmem:[#allocation2 + $0x110] sm:$0xff]
    %v134 = vld [vmem:[#allocation2 + $0x118] sm:$0xff]
    %v135 = vld [vmem:[#allocation2 + $0x120] sm:$0xff]
    %v136 = vld [vmem:[#allocation2 + $0x128] sm:$0xff]
    %v137 = vld [vmem:[#allocation2 + $0x130] sm:$0xff]
    %v138 = vld [vmem:[#allocation2 + $0x138] sm:$0xff]
    %v139 = vld [vmem:[#allocation2 + $0x140] sm:$0xff]
    %v140 = vld [vmem:[#allocation2 + $0x148] sm:$0xff]
    %v141 = vld [vmem:[#allocation2 + $0x150] sm:$0xff]
    %v142 = vld [vmem:[#allocation2 + $0x158] sm:$0xff]
    %v143 = vld [vmem:[#allocation2 + $0x160] sm:$0xff]
    %v144 = vld [vmem:[#allocation2 + $0x168] sm:$0xff]
    %v145 = vld [vmem:[#allocation2 + $0x170] sm:$0xff]
    %v146 = vld [vmem:[#allocation2 + $0x178] sm:$0xff]
    %v147 = vld [vmem:[#allocation2 + $0x180] sm:$0xff]
    %v148 = vld [vmem:[#allocation2 + $0x188] sm:$0xff]
    %v149 = vld [vmem:[#allocation2 + $0x190] sm:$0xff]
    %v150 = vld [vmem:[#allocation2 + $0x198] sm:$0xff]
    %v151 = vld [vmem:[#allocation2 + $0x1a0] sm:$0xff]
    %v152 = vld [vmem:[#allocation2 + $0x1a8] sm:$0xff]
    %v153 = vld [vmem:[#allocation2 + $0x1b0] sm:$0xff]
    %v154 = vld [vmem:[#allocation2 + $0x1b8] sm:$0xff]
    %v155 = vld [vmem:[#allocation2 + $0x1c0] sm:$0xff]
    %v156 = vld [vmem:[#allocation2 + $0x1c8] sm:$0xff]
    %v157 = vld [vmem:[#allocation2 + $0x1d0] sm:$0xff]
    %v158 = vld [vmem:[#allocation2 + $0x1d8] sm:$0xff]
    %v159 = vld [vmem:[#allocation2 + $0x1e0] sm:$0xff]
    %v160 = vld [vmem:[#allocation2 + $0x1e8] sm:$0xff]
    %v161 = vld [vmem:[#allocation2 + $0x1f0] sm:$0xff]
    %v162 = vld [vmem:[#allocation2 + $0x1f8] sm:$0xff]
    %v163 = vpack.c.bf16 %v101, %v99
    %v164 = vpack.c.bf16 %v102, %v100
    %v165 = vpack.c.bf16 %v105, %v103
    %v166 = vpack.c.bf16 %v106, %v104
    %v167 = vpack.c.bf16 %v109, %v107
    %v168 = vpack.c.bf16 %v110, %v108
    %v169 = vpack.c.bf16 %v113, %v111
    %v170 = vpack.c.bf16 %v114, %v112
    %v171 = vpack.c.bf16 %v117, %v115
    %v172 = vpack.c.bf16 %v118, %v116
    %v173 = vpack.c.bf16 %v121, %v119
    %v174 = vpack.c.bf16 %v122, %v120
    %v175 = vpack.c.bf16 %v125, %v123
    %v176 = vpack.c.bf16 %v126, %v124
    %v177 = vpack.c.bf16 %v129, %v127
    %v178 = vpack.c.bf16 %v130, %v128
    %v179 = vpack.c.bf16 %v133, %v131
    %v180 = vpack.c.bf16 %v134, %v132
    %v181 = vpack.c.bf16 %v137, %v135
    %v182 = vpack.c.bf16 %v138, %v136
    %v183 = vpack.c.bf16 %v141, %v139
    %v184 = vpack.c.bf16 %v142, %v140
    %v185 = vpack.c.bf16 %v145, %v143
    %v186 = vpack.c.bf16 %v146, %v144
    %v187 = vpack.c.bf16 %v149, %v147
    %v188 = vpack.c.bf16 %v150, %v148
    %v189 = vpack.c.bf16 %v153, %v151
    %v190 = vpack.c.bf16 %v154, %v152
    %v191 = vpack.c.bf16 %v157, %v155
    %v192 = vpack.c.bf16 %v158, %v156
    %v193 = vpack.c.bf16 %v161, %v159
    %v194 = vpack.c.bf16 %v162, %v160
    %v195 = vld [vmem:[#allocation5] sm:$0xf]
    %v196 = vld [vmem:[#allocation5 + $0x4] sm:$0xf]
    %v197 = vld [vmem:[#allocation5 + $0x8] sm:$0xf]
    %v198 = vld [vmem:[#allocation5 + $0xc] sm:$0xf]
    %v199 = vld [vmem:[#allocation5 + $0x10] sm:$0xf]
    %v200 = vld [vmem:[#allocation5 + $0x14] sm:$0xf]
    %v201 = vld [vmem:[#allocation5 + $0x18] sm:$0xf]
    %v202 = vld [vmem:[#allocation5 + $0x1c] sm:$0xf]
    %v203 = vld [vmem:[#allocation5 + $0x20] sm:$0xf]
    %v204 = vld [vmem:[#allocation5 + $0x24] sm:$0xf]
    %v205 = vld [vmem:[#allocation5 + $0x28] sm:$0xf]
    %v206 = vld [vmem:[#allocation5 + $0x2c] sm:$0xf]
    %v207 = vld [vmem:[#allocation5 + $0x30] sm:$0xf]
    %v208 = vld [vmem:[#allocation5 + $0x34] sm:$0xf]
    %v209 = vld [vmem:[#allocation5 + $0x38] sm:$0xf]
    %v210 = vld [vmem:[#allocation5 + $0x3c] sm:$0xf]
    %v211 = vld [vmem:[#allocation5 + $0x40] sm:$0xf]
    %v212 = vld [vmem:[#allocation5 + $0x44] sm:$0xf]
    %v213 = vld [vmem:[#allocation5 + $0x48] sm:$0xf]
    %v214 = vld [vmem:[#allocation5 + $0x4c] sm:$0xf]
    %v215 = vld [vmem:[#allocation5 + $0x50] sm:$0xf]
    %v216 = vld [vmem:[#allocation5 + $0x54] sm:$0xf]
    %v217 = vld [vmem:[#allocation5 + $0x58] sm:$0xf]
    %v218 = vld [vmem:[#allocation5 + $0x5c] sm:$0xf]
    %v219 = vld [vmem:[#allocation5 + $0x60] sm:$0xf]
    %v220 = vld [vmem:[#allocation5 + $0x64] sm:$0xf]
    %v221 = vld [vmem:[#allocation5 + $0x68] sm:$0xf]
    %v222 = vld [vmem:[#allocation5 + $0x6c] sm:$0xf]
    %v223 = vld [vmem:[#allocation5 + $0x70] sm:$0xf]
    %v224 = vld [vmem:[#allocation5 + $0x74] sm:$0xf]
    %v225 = vld [vmem:[#allocation5 + $0x78] sm:$0xf]
    %v226 = vld [vmem:[#allocation5 + $0x7c] sm:$0xf]
    %v259 = vunpack.c.l.b16 %v195
    %v260 = vunpack.c.l.b16 %v196
    %v261 = vunpack.c.l.b16 %v197
    %v262 = vunpack.c.l.b16 %v198
    %v263 = vunpack.c.l.b16 %v199
    %v264 = vunpack.c.l.b16 %v200
    %v265 = vunpack.c.l.b16 %v201
    %v266 = vunpack.c.l.b16 %v202
    %v267 = vunpack.c.l.b16 %v203
    %v268 = vunpack.c.l.b16 %v204
    %v269 = vunpack.c.l.b16 %v205
    %v270 = vunpack.c.l.b16 %v206
    %v271 = vunpack.c.l.b16 %v207
    %v272 = vunpack.c.l.b16 %v208
    %v273 = vunpack.c.l.b16 %v209
    %v274 = vunpack.c.l.b16 %v210
    %v275 = vunpack.c.l.b16 %v211
    %v276 = vunpack.c.l.b16 %v212
    %v277 = vunpack.c.l.b16 %v213
    %v278 = vunpack.c.l.b16 %v214
    %v279 = vunpack.c.l.b16 %v215
    %v280 = vunpack.c.l.b16 %v216
    %v281 = vunpack.c.l.b16 %v217
    %v282 = vunpack.c.l.b16 %v218
    %v283 = vunpack.c.l.b16 %v219
    %v284 = vunpack.c.l.b16 %v220
    %v285 = vunpack.c.l.b16 %v221
    %v286 = vunpack.c.l.b16 %v222
    %v287 = vunpack.c.l.b16 %v223
    %v288 = vunpack.c.l.b16 %v224
    %v289 = vunpack.c.l.b16 %v225
    %v290 = vunpack.c.l.b16 %v226
    %v291 = vpack.c.b16 %v260, %v259
    %v292 = vpack.c.b16 %v262, %v261
    %v293 = vpack.c.b16 %v264, %v263
    %v294 = vpack.c.b16 %v266, %v265
    %v295 = vpack.c.b16 %v268, %v267
    %v296 = vpack.c.b16 %v270, %v269
    %v297 = vpack.c.b16 %v272, %v271
    %v298 = vpack.c.b16 %v274, %v273
    %v299 = vpack.c.b16 %v276, %v275
    %v300 = vpack.c.b16 %v278, %v277
    %v301 = vpack.c.b16 %v280, %v279
    %v302 = vpack.c.b16 %v282, %v281
    %v303 = vpack.c.b16 %v284, %v283
    %v304 = vpack.c.b16 %v286, %v285
    %v305 = vpack.c.b16 %v288, %v287
    %v306 = vpack.c.b16 %v290, %v289
    %323 = vmatpush.bf16.msra.mxu0 %v298
    %324 = vmatpush.bf16.msra.mxu0 %v297
    %325 = vmatpush.bf16.msra.mxu0 %v296
    %326 = vmatpush.bf16.msra.mxu0 %v295
    %327 = vmatpush.bf16.msra.mxu0 %v294
    %328 = vmatpush.bf16.msra.mxu0 %v293
    %329 = vmatpush.bf16.msra.mxu0 %v292
    %330 = vmatpush.bf16.msra.mxu0 %v291
    %331 = vmatmul.bf16.gmra.mxu0 %v163
    %v332 = vpop.f32.mrf.mxu0
    %v333 = vadd.f32 0.0, %v332
    %v334 = vpop.f32.mrf.mxu0
    %v335 = vadd.f32 0.0, %v334
    %336 = vmatmul.bf16.gmra.mxu0 %v165
    %v337 = vpop.f32.mrf.mxu0
    %v338 = vadd.f32 0.0, %v337
    %v339 = vpop.f32.mrf.mxu0
    %v340 = vadd.f32 0.0, %v339
    %341 = vmatmul.bf16.gmra.mxu0 %v167
    %v342 = vpop.f32.mrf.mxu0
    %v343 = vadd.f32 0.0, %v342
    %v344 = vpop.f32.mrf.mxu0
    %v345 = vadd.f32 0.0, %v344
    %346 = vmatmul.bf16.gmra.mxu0 %v169
    %v347 = vpop.f32.mrf.mxu0
    %v348 = vadd.f32 0.0, %v347
    %v349 = vpop.f32.mrf.mxu0
    %v350 = vadd.f32 0.0, %v349
    %351 = vmatmul.bf16.gmra.mxu0 %v171
    %v352 = vpop.f32.mrf.mxu0
    %v353 = vadd.f32 0.0, %v352
    %v354 = vpop.f32.mrf.mxu0
    %v355 = vadd.f32 0.0, %v354
    %356 = vmatmul.bf16.gmra.mxu0 %v173
    %v357 = vpop.f32.mrf.mxu0
    %v358 = vadd.f32 0.0, %v357
    %v359 = vpop.f32.mrf.mxu0
    %v360 = vadd.f32 0.0, %v359
    %361 = vmatmul.bf16.gmra.mxu0 %v175
    %v362 = vpop.f32.mrf.mxu0
    %v363 = vadd.f32 0.0, %v362
    %v364 = vpop.f32.mrf.mxu0
    %v365 = vadd.f32 0.0, %v364
    %366 = vmatmul.bf16.gmra.mxu0 %v177
    %v367 = vpop.f32.mrf.mxu0
    %v368 = vadd.f32 0.0, %v367
    %v369 = vpop.f32.mrf.mxu0
    %v370 = vadd.f32 0.0, %v369
    %371 = vmatmul.bf16.gmra.mxu0 %v179
    %v372 = vpop.f32.mrf.mxu0
    %v373 = vadd.f32 0.0, %v372
    %v374 = vpop.f32.mrf.mxu0
    %v375 = vadd.f32 0.0, %v374
    %376 = vmatmul.bf16.gmra.mxu0 %v181
    %v377 = vpop.f32.mrf.mxu0
    %v378 = vadd.f32 0.0, %v377
    %v379 = vpop.f32.mrf.mxu0
    %v380 = vadd.f32 0.0, %v379
    %381 = vmatmul.bf16.gmra.mxu0 %v183
    %v382 = vpop.f32.mrf.mxu0
    %v383 = vadd.f32 0.0, %v382
    %v384 = vpop.f32.mrf.mxu0
    %v385 = vadd.f32 0.0, %v384
    %386 = vmatmul.bf16.gmra.mxu0 %v185
    %v387 = vpop.f32.mrf.mxu0
    %v388 = vadd.f32 0.0, %v387
    %v389 = vpop.f32.mrf.mxu0
    %v390 = vadd.f32 0.0, %v389
    %391 = vmatmul.bf16.gmra.mxu0 %v187
    %v392 = vpop.f32.mrf.mxu0
    %v393 = vadd.f32 0.0, %v392
    %v394 = vpop.f32.mrf.mxu0
    %v395 = vadd.f32 0.0, %v394
    %396 = vmatmul.bf16.gmra.mxu0 %v189
    %v397 = vpop.f32.mrf.mxu0
    %v398 = vadd.f32 0.0, %v397
    %v399 = vpop.f32.mrf.mxu0
    %v400 = vadd.f32 0.0, %v399
    %401 = vmatmul.bf16.gmra.mxu0 %v191
    %v402 = vpop.f32.mrf.mxu0
    %v403 = vadd.f32 0.0, %v402
    %v404 = vpop.f32.mrf.mxu0
    %v405 = vadd.f32 0.0, %v404
    %406 = vmatmul.bf16.gmra.mxu0 %v193
    %v407 = vpop.f32.mrf.mxu0
    %v408 = vadd.f32 0.0, %v407
    %v409 = vpop.f32.mrf.mxu0
    %v410 = vadd.f32 0.0, %v409
    %411 = vdwg.mxu0
    %412 = vmatpush.bf16.msra.mxu0 %v306
    %413 = vmatpush.bf16.msra.mxu0 %v305
    %414 = vmatpush.bf16.msra.mxu0 %v304
    %415 = vmatpush.bf16.msra.mxu0 %v303
    %416 = vmatpush.bf16.msra.mxu0 %v302
    %417 = vmatpush.bf16.msra.mxu0 %v301
    %418 = vmatpush.bf16.msra.mxu0 %v300
    %419 = vmatpush.bf16.msra.mxu0 %v299
    %420 = vmatmul.bf16.gmra.mxu0 %v164
    %v421 = vpop.f32.mrf.mxu0
    %v422 = vadd.f32 %v333, %v421
    %v423 = vpop.f32.mrf.mxu0
    %v424 = vadd.f32 %v335, %v423
    %425 = vmatmul.bf16.gmra.mxu0 %v166
    %v426 = vpop.f32.mrf.mxu0
    %v427 = vadd.f32 %v338, %v426
    %v428 = vpop.f32.mrf.mxu0
    %v429 = vadd.f32 %v340, %v428
    %430 = vmatmul.bf16.gmra.mxu0 %v168
    %v431 = vpop.f32.mrf.mxu0
    %v432 = vadd.f32 %v343, %v431
    %v433 = vpop.f32.mrf.mxu0
    %v434 = vadd.f32 %v345, %v433
    %435 = vmatmul.bf16.gmra.mxu0 %v170
    %v436 = vpop.f32.mrf.mxu0
    %v437 = vadd.f32 %v348, %v436
    %v438 = vpop.f32.mrf.mxu0
    %v439 = vadd.f32 %v350, %v438
    %440 = vmatmul.bf16.gmra.mxu0 %v172
    %v441 = vpop.f32.mrf.mxu0
    %v442 = vadd.f32 %v353, %v441
    %v443 = vpop.f32.mrf.mxu0
    %v444 = vadd.f32 %v355, %v443
    %445 = vmatmul.bf16.gmra.mxu0 %v174
    %v446 = vpop.f32.mrf.mxu0
    %v447 = vadd.f32 %v358, %v446
    %v448 = vpop.f32.mrf.mxu0
    %v449 = vadd.f32 %v360, %v448
    %450 = vmatmul.bf16.gmra.mxu0 %v176
    %v451 = vpop.f32.mrf.mxu0
    %v452 = vadd.f32 %v363, %v451
    %v453 = vpop.f32.mrf.mxu0
    %v454 = vadd.f32 %v365, %v453
    %455 = vmatmul.bf16.gmra.mxu0 %v178
    %v456 = vpop.f32.mrf.mxu0
    %v457 = vadd.f32 %v368, %v456
    %v458 = vpop.f32.mrf.mxu0
    %v459 = vadd.f32 %v370, %v458
    %460 = vmatmul.bf16.gmra.mxu0 %v180
    %v461 = vpop.f32.mrf.mxu0
    %v462 = vadd.f32 %v373, %v461
    %v463 = vpop.f32.mrf.mxu0
    %v464 = vadd.f32 %v375, %v463
    %465 = vmatmul.bf16.gmra.mxu0 %v182
    %v466 = vpop.f32.mrf.mxu0
    %v467 = vadd.f32 %v378, %v466
    %v468 = vpop.f32.mrf.mxu0
    %v469 = vadd.f32 %v380, %v468
    %470 = vmatmul.bf16.gmra.mxu0 %v184
    %v471 = vpop.f32.mrf.mxu0
    %v472 = vadd.f32 %v383, %v471
    %v473 = vpop.f32.mrf.mxu0
    %v474 = vadd.f32 %v385, %v473
    %475 = vmatmul.bf16.gmra.mxu0 %v186
    %v476 = vpop.f32.mrf.mxu0
    %v477 = vadd.f32 %v388, %v476
    %v478 = vpop.f32.mrf.mxu0
    %v479 = vadd.f32 %v390, %v478
    %480 = vmatmul.bf16.gmra.mxu0 %v188
    %v481 = vpop.f32.mrf.mxu0
    %v482 = vadd.f32 %v393, %v481
    %v483 = vpop.f32.mrf.mxu0
    %v484 = vadd.f32 %v395, %v483
    %485 = vmatmul.bf16.gmra.mxu0 %v190
    %v486 = vpop.f32.mrf.mxu0
    %v487 = vadd.f32 %v398, %v486
    %v488 = vpop.f32.mrf.mxu0
    %v489 = vadd.f32 %v400, %v488
    %490 = vmatmul.bf16.gmra.mxu0 %v192
    %v491 = vpop.f32.mrf.mxu0
    %v492 = vadd.f32 %v403, %v491
    %v493 = vpop.f32.mrf.mxu0
    %v494 = vadd.f32 %v405, %v493
    %495 = vmatmul.bf16.gmra.mxu0 %v194
    %v496 = vpop.f32.mrf.mxu0
    %v497 = vadd.f32 %v408, %v496
    %v498 = vpop.f32.mrf.mxu0
    %v499 = vadd.f32 %v410, %v498
    %500 = vdwg.mxu0
    %v501 = vadd.f32 %v422, %v424
    %v502 = vadd.f32 %v501, %v427
    %v503 = vadd.f32 %v502, %v429
    %v504 = vadd.f32 %v503, %v432
    %v505 = vadd.f32 %v504, %v434
    %v506 = vadd.f32 %v505, %v437
    %v507 = vadd.f32 %v506, %v439
    %v508 = vadd.f32 %v507, %v442
    %v509 = vadd.f32 %v508, %v444
    %v510 = vadd.f32 %v509, %v447
    %v511 = vadd.f32 %v510, %v449
    %v512 = vadd.f32 %v511, %v452
    %v513 = vadd.f32 %v512, %v454
    %v514 = vadd.f32 %v513, %v457
    %v515 = vadd.f32 %v514, %v459
    %v516 = vadd.f32 %v515, %v462
    %v517 = vadd.f32 %v516, %v464
    %v518 = vadd.f32 %v517, %v467
    %v519 = vadd.f32 %v518, %v469
    %v520 = vadd.f32 %v519, %v472
    %v521 = vadd.f32 %v520, %v474
    %v522 = vadd.f32 %v521, %v477
    %v523 = vadd.f32 %v522, %v479
    %v524 = vadd.f32 %v523, %v482
    %v525 = vadd.f32 %v524, %v484
    %v526 = vadd.f32 %v525, %v487
    %v527 = vadd.f32 %v526, %v489
    %v528 = vadd.f32 %v527, %v492
    %v529 = vadd.f32 %v528, %v494
    %v530 = vadd.f32 %v529, %v497
    %v531 = vadd.f32 %v530, %v499
    %v532 = vrot.slane %v531, 4
    %v533 = vadd.f32 %v531, %v532
    %v534 = vrot.slane %v533, 2
    %v535 = vadd.f32 %v533, %v534
    %v536 = vrot.slane %v535, 1
    %v537 = vadd.f32 %v535, %v536
    %v538 = vmul.f32 %v537, 0.00390625
    %v539 = vsub.f32 %v422, %v538
    %v540 = vsub.f32 %v424, %v538
    %v541 = vsub.f32 %v427, %v538
    %v542 = vsub.f32 %v429, %v538
    %v543 = vsub.f32 %v432, %v538
    %v544 = vsub.f32 %v434, %v538
    %v545 = vsub.f32 %v437, %v538
    %v546 = vsub.f32 %v439, %v538
    %v547 = vsub.f32 %v442, %v538
    %v548 = vsub.f32 %v444, %v538
    %v549 = vsub.f32 %v447, %v538
    %v550 = vsub.f32 %v449, %v538
    %v551 = vsub.f32 %v452, %v538
    %v552 = vsub.f32 %v454, %v538
    %v553 = vsub.f32 %v457, %v538
    %v554 = vsub.f32 %v459, %v538
    %v555 = vsub.f32 %v462, %v538
    %v556 = vsub.f32 %v464, %v538
    %v557 = vsub.f32 %v467, %v538
    %v558 = vsub.f32 %v469, %v538
    %v559 = vsub.f32 %v472, %v538
    %v560 = vsub.f32 %v474, %v538
    %v561 = vsub.f32 %v477, %v538
    %v562 = vsub.f32 %v479, %v538
    %v563 = vsub.f32 %v482, %v538
    %v564 = vsub.f32 %v484, %v538
    %v565 = vsub.f32 %v487, %v538
    %v566 = vsub.f32 %v489, %v538
    %v567 = vsub.f32 %v492, %v538
    %v568 = vsub.f32 %v494, %v538
    %v569 = vsub.f32 %v497, %v538
    %v570 = vsub.f32 %v499, %v538
    %v571 = vmul.f32 %v539, %v539
    %v572 = vmul.f32 %v540, %v540
    %v573 = vmul.f32 %v541, %v541
    %v574 = vmul.f32 %v542, %v542
    %v575 = vmul.f32 %v543, %v543
    %v576 = vmul.f32 %v544, %v544
    %v577 = vmul.f32 %v545, %v545
    %v578 = vmul.f32 %v546, %v546
    %v579 = vmul.f32 %v547, %v547
    %v580 = vmul.f32 %v548, %v548
    %v581 = vmul.f32 %v549, %v549
    %v582 = vmul.f32 %v550, %v550
    %v583 = vmul.f32 %v551, %v551
    %v584 = vmul.f32 %v552, %v552
    %v585 = vmul.f32 %v553, %v553
    %v586 = vmul.f32 %v554, %v554
    %v587 = vmul.f32 %v555, %v555
    %v588 = vmul.f32 %v556, %v556
    %v589 = vmul.f32 %v557, %v557
    %v590 = vmul.f32 %v558, %v558
    %v591 = vmul.f32 %v559, %v559
    %v592 = vmul.f32 %v560, %v560
    %v593 = vmul.f32 %v561, %v561
    %v594 = vmul.f32 %v562, %v562
    %v595 = vmul.f32 %v563, %v563
    %v596 = vmul.f32 %v564, %v564
    %v597 = vmul.f32 %v565, %v565
    %v598 = vmul.f32 %v566, %v566
    %v599 = vmul.f32 %v567, %v567
    %v600 = vmul.f32 %v568, %v568
    %v601 = vmul.f32 %v569, %v569
    %v602 = vmul.f32 %v570, %v570
    %v603 = vadd.f32 %v571, %v572
    %v604 = vadd.f32 %v603, %v573
    %v605 = vadd.f32 %v604, %v574
    %v606 = vadd.f32 %v605, %v575
    %v607 = vadd.f32 %v606, %v576
    %v608 = vadd.f32 %v607, %v577
    %v609 = vadd.f32 %v608, %v578
    %v610 = vadd.f32 %v609, %v579
    %v611 = vadd.f32 %v610, %v580
    %v612 = vadd.f32 %v611, %v581
    %v613 = vadd.f32 %v612, %v582
    %v614 = vadd.f32 %v613, %v583
    %v615 = vadd.f32 %v614, %v584
    %v616 = vadd.f32 %v615, %v585
    %v617 = vadd.f32 %v616, %v586
    %v618 = vadd.f32 %v617, %v587
    %v619 = vadd.f32 %v618, %v588
    %v620 = vadd.f32 %v619, %v589
    %v621 = vadd.f32 %v620, %v590
    %v622 = vadd.f32 %v621, %v591
    %v623 = vadd.f32 %v622, %v592
    %v624 = vadd.f32 %v623, %v593
    %v625 = vadd.f32 %v624, %v594
    %v626 = vadd.f32 %v625, %v595
    %v627 = vadd.f32 %v626, %v596
    %v628 = vadd.f32 %v627, %v597
    %v629 = vadd.f32 %v628, %v598
    %v630 = vadd.f32 %v629, %v599
    %v631 = vadd.f32 %v630, %v600
    %v632 = vadd.f32 %v631, %v601
    %v633 = vadd.f32 %v632, %v602
    %v634 = vrot.slane %v633, 4
    %v635 = vadd.f32 %v633, %v634
    %v636 = vrot.slane %v635, 2
    %v637 = vadd.f32 %v635, %v636
    %v638 = vrot.slane %v637, 1
    %v639 = vadd.f32 %v637, %v638
    %v640 = vmul.f32 %v639, 0.00390625
    %v641 = vadd.f32 %v640, 1e-05
    %v642 = vrsqrt.pop %v641
    %v643 = vmul.f32 %v642, %v641
    %v644 = vmul.f32 %v643, %v642
    %v645 = vmul.f32 0.5, %v644
    %v646 = vsub.f32 1.5, %v645
    %v647 = vmul.f32 %v642, %v646
    %vm648 = vweird.f32 %v641
    %vm649 = vweird.f32 %v642
    %vm650 = vmor %vm648, %vm649
    %v651 = vsel %vm650, %v642, %v647
    %v652 = vmul.f32 %v97, %v651
    %v653 = vperm.slane %v652, 0
    %v654 = vmul.f32 %v539, %v653
    %v655 = vmul.f32 %v540, %v653
    %v656 = vmul.f32 %v541, %v653
    %v657 = vmul.f32 %v542, %v653
    %v658 = vmul.f32 %v543, %v653
    %v659 = vmul.f32 %v544, %v653
    %v660 = vmul.f32 %v545, %v653
    %v661 = vmul.f32 %v546, %v653
    %v662 = vmul.f32 %v547, %v653
    %v663 = vmul.f32 %v548, %v653
    %v664 = vmul.f32 %v549, %v653
    %v665 = vmul.f32 %v550, %v653
    %v666 = vmul.f32 %v551, %v653
    %v667 = vmul.f32 %v552, %v653
    %v668 = vmul.f32 %v553, %v653
    %v669 = vmul.f32 %v554, %v653
    %v670 = vmul.f32 %v555, %v653
    %v671 = vmul.f32 %v556, %v653
    %v672 = vmul.f32 %v557, %v653
    %v673 = vmul.f32 %v558, %v653
    %v674 = vmul.f32 %v559, %v653
    %v675 = vmul.f32 %v560, %v653
    %v676 = vmul.f32 %v561, %v653
    %v677 = vmul.f32 %v562, %v653
    %v678 = vmul.f32 %v563, %v653
    %v679 = vmul.f32 %v564, %v653
    %v680 = vmul.f32 %v565, %v653
    %v681 = vmul.f32 %v566, %v653
    %v682 = vmul.f32 %v567, %v653
    %v683 = vmul.f32 %v568, %v653
    %v684 = vmul.f32 %v569, %v653
    %v685 = vmul.f32 %v570, %v653
    %v686 = vperm.slane %v97, 1
    %v687 = vadd.f32 %v654, %v686
    %v688 = vadd.f32 %v655, %v686
    %v689 = vadd.f32 %v656, %v686
    %v690 = vadd.f32 %v657, %v686
    %v691 = vadd.f32 %v658, %v686
    %v692 = vadd.f32 %v659, %v686
    %v693 = vadd.f32 %v660, %v686
    %v694 = vadd.f32 %v661, %v686
    %v695 = vadd.f32 %v662, %v686
    %v696 = vadd.f32 %v663, %v686
    %v697 = vadd.f32 %v664, %v686
    %v698 = vadd.f32 %v665, %v686
    %v699 = vadd.f32 %v666, %v686
    %v700 = vadd.f32 %v667, %v686
    %v701 = vadd.f32 %v668, %v686
    %v702 = vadd.f32 %v669, %v686
    %v703 = vadd.f32 %v670, %v686
    %v704 = vadd.f32 %v671, %v686
    %v705 = vadd.f32 %v672, %v686
    %v706 = vadd.f32 %v673, %v686
    %v707 = vadd.f32 %v674, %v686
    %v708 = vadd.f32 %v675, %v686
    %v709 = vadd.f32 %v676, %v686
    %v710 = vadd.f32 %v677, %v686
    %v711 = vadd.f32 %v678, %v686
    %v712 = vadd.f32 %v679, %v686
    %v713 = vadd.f32 %v680, %v686
    %v714 = vadd.f32 %v681, %v686
    %v715 = vadd.f32 %v682, %v686
    %v716 = vadd.f32 %v683, %v686
    %v717 = vadd.f32 %v684, %v686
    %v718 = vadd.f32 %v685, %v686
    %v719 = vmax.f32 %v687, 0.0
    %v720 = vmax.f32 %v688, 0.0
    %v721 = vmax.f32 %v689, 0.0
    %v722 = vmax.f32 %v690, 0.0
    %v723 = vmax.f32 %v691, 0.0
    %v724 = vmax.f32 %v692, 0.0
    %v725 = vmax.f32 %v693, 0.0
    %v726 = vmax.f32 %v694, 0.0
    %v727 = vmax.f32 %v695, 0.0
    %v728 = vmax.f32 %v696, 0.0
    %v729 = vmax.f32 %v697, 0.0
    %v730 = vmax.f32 %v698, 0.0
    %v731 = vmax.f32 %v699, 0.0
    %v732 = vmax.f32 %v700, 0.0
    %v733 = vmax.f32 %v701, 0.0
    %v734 = vmax.f32 %v702, 0.0
    %v735 = vmax.f32 %v703, 0.0
    %v736 = vmax.f32 %v704, 0.0
    %v737 = vmax.f32 %v705, 0.0
    %v738 = vmax.f32 %v706, 0.0
    %v739 = vmax.f32 %v707, 0.0
    %v740 = vmax.f32 %v708, 0.0
    %v741 = vmax.f32 %v709, 0.0
    %v742 = vmax.f32 %v710, 0.0
    %v743 = vmax.f32 %v711, 0.0
    %v744 = vmax.f32 %v712, 0.0
    %v745 = vmax.f32 %v713, 0.0
    %v746 = vmax.f32 %v714, 0.0
    %v747 = vmax.f32 %v715, 0.0
    %v748 = vmax.f32 %v716, 0.0
    %v749 = vmax.f32 %v717, 0.0
    %v750 = vmax.f32 %v718, 0.0
    %v751 = vpack.c.bf16 %v720, %v719
    %v752 = vpack.c.bf16 %v722, %v721
    %v753 = vpack.c.bf16 %v724, %v723
    %v754 = vpack.c.bf16 %v726, %v725
    %v755 = vpack.c.bf16 %v728, %v727
    %v756 = vpack.c.bf16 %v730, %v729
    %v757 = vpack.c.bf16 %v732, %v731
    %v758 = vpack.c.bf16 %v734, %v733
    %v759 = vpack.c.bf16 %v736, %v735
    %v760 = vpack.c.bf16 %v738, %v737
    %v761 = vpack.c.bf16 %v740, %v739
    %v762 = vpack.c.bf16 %v742, %v741
    %v763 = vpack.c.bf16 %v744, %v743
    %v764 = vpack.c.bf16 %v746, %v745
    %v765 = vpack.c.bf16 %v748, %v747
    %v766 = vpack.c.bf16 %v750, %v749
    %v767 = vld [vmem:[#allocation7] sm:$0xf]
    %v768 = vld [vmem:[#allocation7 + $0x4] sm:$0xf]
    %v769 = vld [vmem:[#allocation7 + $0x8] sm:$0xf]
    %v770 = vld [vmem:[#allocation7 + $0xc] sm:$0xf]
    %v771 = vld [vmem:[#allocation7 + $0x10] sm:$0xf]
    %v772 = vld [vmem:[#allocation7 + $0x14] sm:$0xf]
    %v773 = vld [vmem:[#allocation7 + $0x18] sm:$0xf]
    %v774 = vld [vmem:[#allocation7 + $0x1c] sm:$0xf]
    %v775 = vld [vmem:[#allocation7 + $0x20] sm:$0xf]
    %v776 = vld [vmem:[#allocation7 + $0x24] sm:$0xf]
    %v777 = vld [vmem:[#allocation7 + $0x28] sm:$0xf]
    %v778 = vld [vmem:[#allocation7 + $0x2c] sm:$0xf]
    %v779 = vld [vmem:[#allocation7 + $0x30] sm:$0xf]
    %v780 = vld [vmem:[#allocation7 + $0x34] sm:$0xf]
    %v781 = vld [vmem:[#allocation7 + $0x38] sm:$0xf]
    %v782 = vld [vmem:[#allocation7 + $0x3c] sm:$0xf]
    %v799 = vunpack.c.l.b16 %v767
    %v800 = vunpack.c.l.b16 %v768
    %v801 = vunpack.c.l.b16 %v769
    %v802 = vunpack.c.l.b16 %v770
    %v803 = vunpack.c.l.b16 %v771
    %v804 = vunpack.c.l.b16 %v772
    %v805 = vunpack.c.l.b16 %v773
    %v806 = vunpack.c.l.b16 %v774
    %v807 = vunpack.c.l.b16 %v775
    %v808 = vunpack.c.l.b16 %v776
    %v809 = vunpack.c.l.b16 %v777
    %v810 = vunpack.c.l.b16 %v778
    %v811 = vunpack.c.l.b16 %v779
    %v812 = vunpack.c.l.b16 %v780
    %v813 = vunpack.c.l.b16 %v781
    %v814 = vunpack.c.l.b16 %v782
    %v815 = vpack.c.b16 %v800, %v799
    %v816 = vpack.c.b16 %v802, %v801
    %v817 = vpack.c.b16 %v804, %v803
    %v818 = vpack.c.b16 %v806, %v805
    %v819 = vpack.c.b16 %v808, %v807
    %v820 = vpack.c.b16 %v810, %v809
    %v821 = vpack.c.b16 %v812, %v811
    %v822 = vpack.c.b16 %v814, %v813
    %831 = vmatpush.bf16.msra.mxu0 %v822
    %832 = vmatpush.bf16.msra.mxu0 %v821
    %833 = vmatpush.bf16.msra.mxu0 %v820
    %834 = vmatpush.bf16.msra.mxu0 %v819
    %835 = vmatpush.bf16.msra.mxu0 %v818
    %836 = vmatpush.bf16.msra.mxu0 %v817
    %837 = vmatpush.bf16.msra.mxu0 %v816
    %838 = vmatpush.bf16.msra.mxu0 %v815
    %839 = vmatmul.bf16.gmra.mxu0 %v751
    %v840 = vpop.f32.mrf.mxu0
    %v841 = vadd.f32 0.0, %v840
    %v842 = vpop.f32.mrf.mxu0
    %v843 = vadd.f32 0.0, %v842
    %844 = vmatmul.bf16.gmra.mxu0 %v752
    %v845 = vpop.f32.mrf.mxu0
    %v846 = vadd.f32 0.0, %v845
    %v847 = vpop.f32.mrf.mxu0
    %v848 = vadd.f32 0.0, %v847
    %849 = vmatmul.bf16.gmra.mxu0 %v753
    %v850 = vpop.f32.mrf.mxu0
    %v851 = vadd.f32 0.0, %v850
    %v852 = vpop.f32.mrf.mxu0
    %v853 = vadd.f32 0.0, %v852
    %854 = vmatmul.bf16.gmra.mxu0 %v754
    %v855 = vpop.f32.mrf.mxu0
    %v856 = vadd.f32 0.0, %v855
    %v857 = vpop.f32.mrf.mxu0
    %v858 = vadd.f32 0.0, %v857
    %859 = vmatmul.bf16.gmra.mxu0 %v755
    %v860 = vpop.f32.mrf.mxu0
    %v861 = vadd.f32 0.0, %v860
    %v862 = vpop.f32.mrf.mxu0
    %v863 = vadd.f32 0.0, %v862
    %864 = vmatmul.bf16.gmra.mxu0 %v756
    %v865 = vpop.f32.mrf.mxu0
    %v866 = vadd.f32 0.0, %v865
    %v867 = vpop.f32.mrf.mxu0
    %v868 = vadd.f32 0.0, %v867
    %869 = vmatmul.bf16.gmra.mxu0 %v757
    %v870 = vpop.f32.mrf.mxu0
    %v871 = vadd.f32 0.0, %v870
    %v872 = vpop.f32.mrf.mxu0
    %v873 = vadd.f32 0.0, %v872
    %874 = vmatmul.bf16.gmra.mxu0 %v758
    %v875 = vpop.f32.mrf.mxu0
    %v876 = vadd.f32 0.0, %v875
    %v877 = vpop.f32.mrf.mxu0
    %v878 = vadd.f32 0.0, %v877
    %879 = vmatmul.bf16.gmra.mxu0 %v759
    %v880 = vpop.f32.mrf.mxu0
    %v881 = vadd.f32 0.0, %v880
    %v882 = vpop.f32.mrf.mxu0
    %v883 = vadd.f32 0.0, %v882
    %884 = vmatmul.bf16.gmra.mxu0 %v760
    %v885 = vpop.f32.mrf.mxu0
    %v886 = vadd.f32 0.0, %v885
    %v887 = vpop.f32.mrf.mxu0
    %v888 = vadd.f32 0.0, %v887
    %889 = vmatmul.bf16.gmra.mxu0 %v761
    %v890 = vpop.f32.mrf.mxu0
    %v891 = vadd.f32 0.0, %v890
    %v892 = vpop.f32.mrf.mxu0
    %v893 = vadd.f32 0.0, %v892
    %894 = vmatmul.bf16.gmra.mxu0 %v762
    %v895 = vpop.f32.mrf.mxu0
    %v896 = vadd.f32 0.0, %v895
    %v897 = vpop.f32.mrf.mxu0
    %v898 = vadd.f32 0.0, %v897
    %899 = vmatmul.bf16.gmra.mxu0 %v763
    %v900 = vpop.f32.mrf.mxu0
    %v901 = vadd.f32 0.0, %v900
    %v902 = vpop.f32.mrf.mxu0
    %v903 = vadd.f32 0.0, %v902
    %904 = vmatmul.bf16.gmra.mxu0 %v764
    %v905 = vpop.f32.mrf.mxu0
    %v906 = vadd.f32 0.0, %v905
    %v907 = vpop.f32.mrf.mxu0
    %v908 = vadd.f32 0.0, %v907
    %909 = vmatmul.bf16.gmra.mxu0 %v765
    %v910 = vpop.f32.mrf.mxu0
    %v911 = vadd.f32 0.0, %v910
    %v912 = vpop.f32.mrf.mxu0
    %v913 = vadd.f32 0.0, %v912
    %914 = vmatmul.bf16.gmra.mxu0 %v766
    %v915 = vpop.f32.mrf.mxu0
    %v916 = vadd.f32 0.0, %v915
    %v917 = vpop.f32.mrf.mxu0
    %v918 = vadd.f32 0.0, %v917
    %919 = vdwg.mxu0
    %v920 = vadd.f32 %v841, %v843
    %v921 = vadd.f32 %v920, %v846
    %v922 = vadd.f32 %v921, %v848
    %v923 = vadd.f32 %v922, %v851
    %v924 = vadd.f32 %v923, %v853
    %v925 = vadd.f32 %v924, %v856
    %v926 = vadd.f32 %v925, %v858
    %v927 = vadd.f32 %v926, %v861
    %v928 = vadd.f32 %v927, %v863
    %v929 = vadd.f32 %v928, %v866
    %v930 = vadd.f32 %v929, %v868
    %v931 = vadd.f32 %v930, %v871
    %v932 = vadd.f32 %v931, %v873
    %v933 = vadd.f32 %v932, %v876
    %v934 = vadd.f32 %v933, %v878
    %v935 = vadd.f32 %v934, %v881
    %v936 = vadd.f32 %v935, %v883
    %v937 = vadd.f32 %v936, %v886
    %v938 = vadd.f32 %v937, %v888
    %v939 = vadd.f32 %v938, %v891
    %v940 = vadd.f32 %v939, %v893
    %v941 = vadd.f32 %v940, %v896
    %v942 = vadd.f32 %v941, %v898
    %v943 = vadd.f32 %v942, %v901
    %v944 = vadd.f32 %v943, %v903
    %v945 = vadd.f32 %v944, %v906
    %v946 = vadd.f32 %v945, %v908
    %v947 = vadd.f32 %v946, %v911
    %v948 = vadd.f32 %v947, %v913
    %v949 = vadd.f32 %v948, %v916
    %v950 = vadd.f32 %v949, %v918
    %v951 = vrot.slane %v950, 4
    %v952 = vadd.f32 %v950, %v951
    %v953 = vrot.slane %v952, 2
    %v954 = vadd.f32 %v952, %v953
    %v955 = vrot.slane %v954, 1
    %v956 = vadd.f32 %v954, %v955
    %v957 = vmul.f32 %v956, 0.00390625
    %v958 = vsub.f32 %v841, %v957
    %v959 = vsub.f32 %v843, %v957
    %v960 = vsub.f32 %v846, %v957
    %v961 = vsub.f32 %v848, %v957
    %v962 = vsub.f32 %v851, %v957
    %v963 = vsub.f32 %v853, %v957
    %v964 = vsub.f32 %v856, %v957
    %v965 = vsub.f32 %v858, %v957
    %v966 = vsub.f32 %v861, %v957
    %v967 = vsub.f32 %v863, %v957
    %v968 = vsub.f32 %v866, %v957
    %v969 = vsub.f32 %v868, %v957
    %v970 = vsub.f32 %v871, %v957
    %v971 = vsub.f32 %v873, %v957
    %v972 = vsub.f32 %v876, %v957
    %v973 = vsub.f32 %v878, %v957
    %v974 = vsub.f32 %v881, %v957
    %v975 = vsub.f32 %v883, %v957
    %v976 = vsub.f32 %v886, %v957
    %v977 = vsub.f32 %v888, %v957
    %v978 = vsub.f32 %v891, %v957
    %v979 = vsub.f32 %v893, %v957
    %v980 = vsub.f32 %v896, %v957
    %v981 = vsub.f32 %v898, %v957
    %v982 = vsub.f32 %v901, %v957
    %v983 = vsub.f32 %v903, %v957
    %v984 = vsub.f32 %v906, %v957
    %v985 = vsub.f32 %v908, %v957
    %v986 = vsub.f32 %v911, %v957
    %v987 = vsub.f32 %v913, %v957
    %v988 = vsub.f32 %v916, %v957
    %v989 = vsub.f32 %v918, %v957
    %v990 = vmul.f32 %v958, %v958
    %v991 = vmul.f32 %v959, %v959
    %v992 = vmul.f32 %v960, %v960
    %v993 = vmul.f32 %v961, %v961
    %v994 = vmul.f32 %v962, %v962
    %v995 = vmul.f32 %v963, %v963
    %v996 = vmul.f32 %v964, %v964
    %v997 = vmul.f32 %v965, %v965
    %v998 = vmul.f32 %v966, %v966
    %v999 = vmul.f32 %v967, %v967
    %v1000 = vmul.f32 %v968, %v968
    %v1001 = vmul.f32 %v969, %v969
    %v1002 = vmul.f32 %v970, %v970
    %v1003 = vmul.f32 %v971, %v971
    %v1004 = vmul.f32 %v972, %v972
    %v1005 = vmul.f32 %v973, %v973
    %v1006 = vmul.f32 %v974, %v974
    %v1007 = vmul.f32 %v975, %v975
    %v1008 = vmul.f32 %v976, %v976
    %v1009 = vmul.f32 %v977, %v977
    %v1010 = vmul.f32 %v978, %v978
    %v1011 = vmul.f32 %v979, %v979
    %v1012 = vmul.f32 %v980, %v980
    %v1013 = vmul.f32 %v981, %v981
    %v1014 = vmul.f32 %v982, %v982
    %v1015 = vmul.f32 %v983, %v983
    %v1016 = vmul.f32 %v984, %v984
    %v1017 = vmul.f32 %v985, %v985
    %v1018 = vmul.f32 %v986, %v986
    %v1019 = vmul.f32 %v987, %v987
    %v1020 = vmul.f32 %v988, %v988
    %v1021 = vmul.f32 %v989, %v989
    %v1022 = vadd.f32 %v990, %v991
    %v1023 = vadd.f32 %v1022, %v992
    %v1024 = vadd.f32 %v1023, %v993
    %v1025 = vadd.f32 %v1024, %v994
    %v1026 = vadd.f32 %v1025, %v995
    %v1027 = vadd.f32 %v1026, %v996
    %v1028 = vadd.f32 %v1027, %v997
    %v1029 = vadd.f32 %v1028, %v998
    %v1030 = vadd.f32 %v1029, %v999
    %v1031 = vadd.f32 %v1030, %v1000
    %v1032 = vadd.f32 %v1031, %v1001
    %v1033 = vadd.f32 %v1032, %v1002
    %v1034 = vadd.f32 %v1033, %v1003
    %v1035 = vadd.f32 %v1034, %v1004
    %v1036 = vadd.f32 %v1035, %v1005
    %v1037 = vadd.f32 %v1036, %v1006
    %v1038 = vadd.f32 %v1037, %v1007
    %v1039 = vadd.f32 %v1038, %v1008
    %v1040 = vadd.f32 %v1039, %v1009
    %v1041 = vadd.f32 %v1040, %v1010
    %v1042 = vadd.f32 %v1041, %v1011
    %v1043 = vadd.f32 %v1042, %v1012
    %v1044 = vadd.f32 %v1043, %v1013
    %v1045 = vadd.f32 %v1044, %v1014
    %v1046 = vadd.f32 %v1045, %v1015
    %v1047 = vadd.f32 %v1046, %v1016
    %v1048 = vadd.f32 %v1047, %v1017
    %v1049 = vadd.f32 %v1048, %v1018
    %v1050 = vadd.f32 %v1049, %v1019
    %v1051 = vadd.f32 %v1050, %v1020
    %v1052 = vadd.f32 %v1051, %v1021
    %v1053 = vrot.slane %v1052, 4
    %v1054 = vadd.f32 %v1052, %v1053
    %v1055 = vrot.slane %v1054, 2
    %v1056 = vadd.f32 %v1054, %v1055
    %v1057 = vrot.slane %v1056, 1
    %v1058 = vadd.f32 %v1056, %v1057
    %v1059 = vmul.f32 %v1058, 0.00390625
    %v1060 = vadd.f32 %v1059, 1e-05
    %v1061 = vrsqrt.pop %v1060
    %v1062 = vmul.f32 %v1061, %v1060
    %v1063 = vmul.f32 %v1062, %v1061
    %v1064 = vmul.f32 0.5, %v1063
    %v1065 = vsub.f32 1.5, %v1064
    %v1066 = vmul.f32 %v1061, %v1065
    %vm1067 = vweird.f32 %v1060
    %vm1068 = vweird.f32 %v1061
    %vm1069 = vmor %vm1067, %vm1068
    %v1070 = vsel %vm1069, %v1061, %v1066
    %v1071 = vmul.f32 %v97, %v1070
    %v1072 = vperm.slane %v1071, 2
    %v1073 = vmul.f32 %v958, %v1072
    %v1074 = vmul.f32 %v959, %v1072
    %v1075 = vmul.f32 %v960, %v1072
    %v1076 = vmul.f32 %v961, %v1072
    %v1077 = vmul.f32 %v962, %v1072
    %v1078 = vmul.f32 %v963, %v1072
    %v1079 = vmul.f32 %v964, %v1072
    %v1080 = vmul.f32 %v965, %v1072
    %v1081 = vmul.f32 %v966, %v1072
    %v1082 = vmul.f32 %v967, %v1072
    %v1083 = vmul.f32 %v968, %v1072
    %v1084 = vmul.f32 %v969, %v1072
    %v1085 = vmul.f32 %v970, %v1072
    %v1086 = vmul.f32 %v971, %v1072
    %v1087 = vmul.f32 %v972, %v1072
    %v1088 = vmul.f32 %v973, %v1072
    %v1089 = vmul.f32 %v974, %v1072
    %v1090 = vmul.f32 %v975, %v1072
    %v1091 = vmul.f32 %v976, %v1072
    %v1092 = vmul.f32 %v977, %v1072
    %v1093 = vmul.f32 %v978, %v1072
    %v1094 = vmul.f32 %v979, %v1072
    %v1095 = vmul.f32 %v980, %v1072
    %v1096 = vmul.f32 %v981, %v1072
    %v1097 = vmul.f32 %v982, %v1072
    %v1098 = vmul.f32 %v983, %v1072
    %v1099 = vmul.f32 %v984, %v1072
    %v1100 = vmul.f32 %v985, %v1072
    %v1101 = vmul.f32 %v986, %v1072
    %v1102 = vmul.f32 %v987, %v1072
    %v1103 = vmul.f32 %v988, %v1072
    %v1104 = vmul.f32 %v989, %v1072
    %v1105 = vperm.slane %v97, 3
    %v1106 = vadd.f32 %v1073, %v1105
    %v1107 = vadd.f32 %v1074, %v1105
    %v1108 = vadd.f32 %v1075, %v1105
    %v1109 = vadd.f32 %v1076, %v1105
    %v1110 = vadd.f32 %v1077, %v1105
    %v1111 = vadd.f32 %v1078, %v1105
    %v1112 = vadd.f32 %v1079, %v1105
    %v1113 = vadd.f32 %v1080, %v1105
    %v1114 = vadd.f32 %v1081, %v1105
    %v1115 = vadd.f32 %v1082, %v1105
    %v1116 = vadd.f32 %v1083, %v1105
    %v1117 = vadd.f32 %v1084, %v1105
    %v1118 = vadd.f32 %v1085, %v1105
    %v1119 = vadd.f32 %v1086, %v1105
    %v1120 = vadd.f32 %v1087, %v1105
    %v1121 = vadd.f32 %v1088, %v1105
    %v1122 = vadd.f32 %v1089, %v1105
    %v1123 = vadd.f32 %v1090, %v1105
    %v1124 = vadd.f32 %v1091, %v1105
    %v1125 = vadd.f32 %v1092, %v1105
    %v1126 = vadd.f32 %v1093, %v1105
    %v1127 = vadd.f32 %v1094, %v1105
    %v1128 = vadd.f32 %v1095, %v1105
    %v1129 = vadd.f32 %v1096, %v1105
    %v1130 = vadd.f32 %v1097, %v1105
    %v1131 = vadd.f32 %v1098, %v1105
    %v1132 = vadd.f32 %v1099, %v1105
    %v1133 = vadd.f32 %v1100, %v1105
    %v1134 = vadd.f32 %v1101, %v1105
    %v1135 = vadd.f32 %v1102, %v1105
    %v1136 = vadd.f32 %v1103, %v1105
    %v1137 = vadd.f32 %v1104, %v1105
    %v1138 = vmax.f32 %v1106, 0.0
    %v1139 = vmax.f32 %v1107, 0.0
    %v1140 = vmax.f32 %v1108, 0.0
    %v1141 = vmax.f32 %v1109, 0.0
    %v1142 = vmax.f32 %v1110, 0.0
    %v1143 = vmax.f32 %v1111, 0.0
    %v1144 = vmax.f32 %v1112, 0.0
    %v1145 = vmax.f32 %v1113, 0.0
    %v1146 = vmax.f32 %v1114, 0.0
    %v1147 = vmax.f32 %v1115, 0.0
    %v1148 = vmax.f32 %v1116, 0.0
    %v1149 = vmax.f32 %v1117, 0.0
    %v1150 = vmax.f32 %v1118, 0.0
    %v1151 = vmax.f32 %v1119, 0.0
    %v1152 = vmax.f32 %v1120, 0.0
    %v1153 = vmax.f32 %v1121, 0.0
    %v1154 = vmax.f32 %v1122, 0.0
    %v1155 = vmax.f32 %v1123, 0.0
    %v1156 = vmax.f32 %v1124, 0.0
    %v1157 = vmax.f32 %v1125, 0.0
    %v1158 = vmax.f32 %v1126, 0.0
    %v1159 = vmax.f32 %v1127, 0.0
    %v1160 = vmax.f32 %v1128, 0.0
    %v1161 = vmax.f32 %v1129, 0.0
    %v1162 = vmax.f32 %v1130, 0.0
    %v1163 = vmax.f32 %v1131, 0.0
    %v1164 = vmax.f32 %v1132, 0.0
    %v1165 = vmax.f32 %v1133, 0.0
    %v1166 = vmax.f32 %v1134, 0.0
    %v1167 = vmax.f32 %v1135, 0.0
    %v1168 = vmax.f32 %v1136, 0.0
    %v1169 = vmax.f32 %v1137, 0.0
    %v1170 = vpack.c.bf16 %v1139, %v1138
    %v1171 = vpack.c.bf16 %v1141, %v1140
    %v1172 = vpack.c.bf16 %v1143, %v1142
    %v1173 = vpack.c.bf16 %v1145, %v1144
    %v1174 = vpack.c.bf16 %v1147, %v1146
    %v1175 = vpack.c.bf16 %v1149, %v1148
    %v1176 = vpack.c.bf16 %v1151, %v1150
    %v1177 = vpack.c.bf16 %v1153, %v1152
    %v1178 = vpack.c.bf16 %v1155, %v1154
    %v1179 = vpack.c.bf16 %v1157, %v1156
    %v1180 = vpack.c.bf16 %v1159, %v1158
    %v1181 = vpack.c.bf16 %v1161, %v1160
    %v1182 = vpack.c.bf16 %v1163, %v1162
    %v1183 = vpack.c.bf16 %v1165, %v1164
    %v1184 = vpack.c.bf16 %v1167, %v1166
    %v1185 = vpack.c.bf16 %v1169, %v1168
    %s1186 = scalar_lea.vmem [#allocation7], 64
    %v1187 = vld [vmem:[%s1186] sm:$0xf]
    %v1188 = vld [vmem:[%s1186 + $0x4] sm:$0xf]
    %v1189 = vld [vmem:[%s1186 + $0x8] sm:$0xf]
    %v1190 = vld [vmem:[%s1186 + $0xc] sm:$0xf]
    %v1191 = vld [vmem:[%s1186 + $0x10] sm:$0xf]
    %v1192 = vld [vmem:[%s1186 + $0x14] sm:$0xf]
    %v1193 = vld [vmem:[%s1186 + $0x18] sm:$0xf]
    %v1194 = vld [vmem:[%s1186 + $0x1c] sm:$0xf]
    %v1195 = vld [vmem:[%s1186 + $0x20] sm:$0xf]
    %v1196 = vld [vmem:[%s1186 + $0x24] sm:$0xf]
    %v1197 = vld [vmem:[%s1186 + $0x28] sm:$0xf]
    %v1198 = vld [vmem:[%s1186 + $0x2c] sm:$0xf]
    %v1199 = vld [vmem:[%s1186 + $0x30] sm:$0xf]
    %v1200 = vld [vmem:[%s1186 + $0x34] sm:$0xf]
    %v1201 = vld [vmem:[%s1186 + $0x38] sm:$0xf]
    %v1202 = vld [vmem:[%s1186 + $0x3c] sm:$0xf]
    %v1219 = vunpack.c.l.b16 %v1187
    %v1220 = vunpack.c.l.b16 %v1188
    %v1221 = vunpack.c.l.b16 %v1189
    %v1222 = vunpack.c.l.b16 %v1190
    %v1223 = vunpack.c.l.b16 %v1191
    %v1224 = vunpack.c.l.b16 %v1192
    %v1225 = vunpack.c.l.b16 %v1193
    %v1226 = vunpack.c.l.b16 %v1194
    %v1227 = vunpack.c.l.b16 %v1195
    %v1228 = vunpack.c.l.b16 %v1196
    %v1229 = vunpack.c.l.b16 %v1197
    %v1230 = vunpack.c.l.b16 %v1198
    %v1231 = vunpack.c.l.b16 %v1199
    %v1232 = vunpack.c.l.b16 %v1200
    %v1233 = vunpack.c.l.b16 %v1201
    %v1234 = vunpack.c.l.b16 %v1202
    %v1235 = vpack.c.b16 %v1220, %v1219
    %v1236 = vpack.c.b16 %v1222, %v1221
    %v1237 = vpack.c.b16 %v1224, %v1223
    %v1238 = vpack.c.b16 %v1226, %v1225
    %v1239 = vpack.c.b16 %v1228, %v1227
    %v1240 = vpack.c.b16 %v1230, %v1229
    %v1241 = vpack.c.b16 %v1232, %v1231
    %v1242 = vpack.c.b16 %v1234, %v1233
    %1251 = vmatpush.bf16.msra.mxu0 %v1242
    %1252 = vmatpush.bf16.msra.mxu0 %v1241
    %1253 = vmatpush.bf16.msra.mxu0 %v1240
    %1254 = vmatpush.bf16.msra.mxu0 %v1239
    %1255 = vmatpush.bf16.msra.mxu0 %v1238
    %1256 = vmatpush.bf16.msra.mxu0 %v1237
    %1257 = vmatpush.bf16.msra.mxu0 %v1236
    %1258 = vmatpush.bf16.msra.mxu0 %v1235
    %1259 = vmatmul.bf16.gmra.mxu0 %v1170
    %v1260 = vpop.f32.mrf.mxu0
    %v1261 = vadd.f32 0.0, %v1260
    %v1262 = vpop.f32.mrf.mxu0
    %v1263 = vadd.f32 0.0, %v1262
    %1264 = vmatmul.bf16.gmra.mxu0 %v1171
    %v1265 = vpop.f32.mrf.mxu0
    %v1266 = vadd.f32 0.0, %v1265
    %v1267 = vpop.f32.mrf.mxu0
    %v1268 = vadd.f32 0.0, %v1267
    %1269 = vmatmul.bf16.gmra.mxu0 %v1172
    %v1270 = vpop.f32.mrf.mxu0
    %v1271 = vadd.f32 0.0, %v1270
    %v1272 = vpop.f32.mrf.mxu0
    %v1273 = vadd.f32 0.0, %v1272
    %1274 = vmatmul.bf16.gmra.mxu0 %v1173
    %v1275 = vpop.f32.mrf.mxu0
    %v1276 = vadd.f32 0.0, %v1275
    %v1277 = vpop.f32.mrf.mxu0
    %v1278 = vadd.f32 0.0, %v1277
    %1279 = vmatmul.bf16.gmra.mxu0 %v1174
    %v1280 = vpop.f32.mrf.mxu0
    %v1281 = vadd.f32 0.0, %v1280
    %v1282 = vpop.f32.mrf.mxu0
    %v1283 = vadd.f32 0.0, %v1282
    %1284 = vmatmul.bf16.gmra.mxu0 %v1175
    %v1285 = vpop.f32.mrf.mxu0
    %v1286 = vadd.f32 0.0, %v1285
    %v1287 = vpop.f32.mrf.mxu0
    %v1288 = vadd.f32 0.0, %v1287
    %1289 = vmatmul.bf16.gmra.mxu0 %v1176
    %v1290 = vpop.f32.mrf.mxu0
    %v1291 = vadd.f32 0.0, %v1290
    %v1292 = vpop.f32.mrf.mxu0
    %v1293 = vadd.f32 0.0, %v1292
    %1294 = vmatmul.bf16.gmra.mxu0 %v1177
    %v1295 = vpop.f32.mrf.mxu0
    %v1296 = vadd.f32 0.0, %v1295
    %v1297 = vpop.f32.mrf.mxu0
    %v1298 = vadd.f32 0.0, %v1297
    %1299 = vmatmul.bf16.gmra.mxu0 %v1178
    %v1300 = vpop.f32.mrf.mxu0
    %v1301 = vadd.f32 0.0, %v1300
    %v1302 = vpop.f32.mrf.mxu0
    %v1303 = vadd.f32 0.0, %v1302
    %1304 = vmatmul.bf16.gmra.mxu0 %v1179
    %v1305 = vpop.f32.mrf.mxu0
    %v1306 = vadd.f32 0.0, %v1305
    %v1307 = vpop.f32.mrf.mxu0
    %v1308 = vadd.f32 0.0, %v1307
    %1309 = vmatmul.bf16.gmra.mxu0 %v1180
    %v1310 = vpop.f32.mrf.mxu0
    %v1311 = vadd.f32 0.0, %v1310
    %v1312 = vpop.f32.mrf.mxu0
    %v1313 = vadd.f32 0.0, %v1312
    %1314 = vmatmul.bf16.gmra.mxu0 %v1181
    %v1315 = vpop.f32.mrf.mxu0
    %v1316 = vadd.f32 0.0, %v1315
    %v1317 = vpop.f32.mrf.mxu0
    %v1318 = vadd.f32 0.0, %v1317
    %1319 = vmatmul.bf16.gmra.mxu0 %v1182
    %v1320 = vpop.f32.mrf.mxu0
    %v1321 = vadd.f32 0.0, %v1320
    %v1322 = vpop.f32.mrf.mxu0
    %v1323 = vadd.f32 0.0, %v1322
    %1324 = vmatmul.bf16.gmra.mxu0 %v1183
    %v1325 = vpop.f32.mrf.mxu0
    %v1326 = vadd.f32 0.0, %v1325
    %v1327 = vpop.f32.mrf.mxu0
    %v1328 = vadd.f32 0.0, %v1327
    %1329 = vmatmul.bf16.gmra.mxu0 %v1184
    %v1330 = vpop.f32.mrf.mxu0
    %v1331 = vadd.f32 0.0, %v1330
    %v1332 = vpop.f32.mrf.mxu0
    %v1333 = vadd.f32 0.0, %v1332
    %1334 = vmatmul.bf16.gmra.mxu0 %v1185
    %v1335 = vpop.f32.mrf.mxu0
    %v1336 = vadd.f32 0.0, %v1335
    %v1337 = vpop.f32.mrf.mxu0
    %v1338 = vadd.f32 0.0, %v1337
    %1339 = vdwg.mxu0
    %v1340 = vadd.f32 %v1261, %v1263
    %v1341 = vadd.f32 %v1340, %v1266
    %v1342 = vadd.f32 %v1341, %v1268
    %v1343 = vadd.f32 %v1342, %v1271
    %v1344 = vadd.f32 %v1343, %v1273
    %v1345 = vadd.f32 %v1344, %v1276
    %v1346 = vadd.f32 %v1345, %v1278
    %v1347 = vadd.f32 %v1346, %v1281
    %v1348 = vadd.f32 %v1347, %v1283
    %v1349 = vadd.f32 %v1348, %v1286
    %v1350 = vadd.f32 %v1349, %v1288
    %v1351 = vadd.f32 %v1350, %v1291
    %v1352 = vadd.f32 %v1351, %v1293
    %v1353 = vadd.f32 %v1352, %v1296
    %v1354 = vadd.f32 %v1353, %v1298
    %v1355 = vadd.f32 %v1354, %v1301
    %v1356 = vadd.f32 %v1355, %v1303
    %v1357 = vadd.f32 %v1356, %v1306
    %v1358 = vadd.f32 %v1357, %v1308
    %v1359 = vadd.f32 %v1358, %v1311
    %v1360 = vadd.f32 %v1359, %v1313
    %v1361 = vadd.f32 %v1360, %v1316
    %v1362 = vadd.f32 %v1361, %v1318
    %v1363 = vadd.f32 %v1362, %v1321
    %v1364 = vadd.f32 %v1363, %v1323
    %v1365 = vadd.f32 %v1364, %v1326
    %v1366 = vadd.f32 %v1365, %v1328
    %v1367 = vadd.f32 %v1366, %v1331
    %v1368 = vadd.f32 %v1367, %v1333
    %v1369 = vadd.f32 %v1368, %v1336
    %v1370 = vadd.f32 %v1369, %v1338
    %v1371 = vrot.slane %v1370, 4
    %v1372 = vadd.f32 %v1370, %v1371
    %v1373 = vrot.slane %v1372, 2
    %v1374 = vadd.f32 %v1372, %v1373
    %v1375 = vrot.slane %v1374, 1
    %v1376 = vadd.f32 %v1374, %v1375
    %v1377 = vmul.f32 %v1376, 0.00390625
    %v1378 = vsub.f32 %v1261, %v1377
    %v1379 = vsub.f32 %v1263, %v1377
    %v1380 = vsub.f32 %v1266, %v1377
    %v1381 = vsub.f32 %v1268, %v1377
    %v1382 = vsub.f32 %v1271, %v1377
    %v1383 = vsub.f32 %v1273, %v1377
    %v1384 = vsub.f32 %v1276, %v1377
    %v1385 = vsub.f32 %v1278, %v1377
    %v1386 = vsub.f32 %v1281, %v1377
    %v1387 = vsub.f32 %v1283, %v1377
    %v1388 = vsub.f32 %v1286, %v1377
    %v1389 = vsub.f32 %v1288, %v1377
    %v1390 = vsub.f32 %v1291, %v1377
    %v1391 = vsub.f32 %v1293, %v1377
    %v1392 = vsub.f32 %v1296, %v1377
    %v1393 = vsub.f32 %v1298, %v1377
    %v1394 = vsub.f32 %v1301, %v1377
    %v1395 = vsub.f32 %v1303, %v1377
    %v1396 = vsub.f32 %v1306, %v1377
    %v1397 = vsub.f32 %v1308, %v1377
    %v1398 = vsub.f32 %v1311, %v1377
    %v1399 = vsub.f32 %v1313, %v1377
    %v1400 = vsub.f32 %v1316, %v1377
    %v1401 = vsub.f32 %v1318, %v1377
    %v1402 = vsub.f32 %v1321, %v1377
    %v1403 = vsub.f32 %v1323, %v1377
    %v1404 = vsub.f32 %v1326, %v1377
    %v1405 = vsub.f32 %v1328, %v1377
    %v1406 = vsub.f32 %v1331, %v1377
    %v1407 = vsub.f32 %v1333, %v1377
    %v1408 = vsub.f32 %v1336, %v1377
    %v1409 = vsub.f32 %v1338, %v1377
    %v1410 = vmul.f32 %v1378, %v1378
    %v1411 = vmul.f32 %v1379, %v1379
    %v1412 = vmul.f32 %v1380, %v1380
    %v1413 = vmul.f32 %v1381, %v1381
    %v1414 = vmul.f32 %v1382, %v1382
    %v1415 = vmul.f32 %v1383, %v1383
    %v1416 = vmul.f32 %v1384, %v1384
    %v1417 = vmul.f32 %v1385, %v1385
    %v1418 = vmul.f32 %v1386, %v1386
    %v1419 = vmul.f32 %v1387, %v1387
    %v1420 = vmul.f32 %v1388, %v1388
    %v1421 = vmul.f32 %v1389, %v1389
    %v1422 = vmul.f32 %v1390, %v1390
    %v1423 = vmul.f32 %v1391, %v1391
    %v1424 = vmul.f32 %v1392, %v1392
    %v1425 = vmul.f32 %v1393, %v1393
    %v1426 = vmul.f32 %v1394, %v1394
    %v1427 = vmul.f32 %v1395, %v1395
    %v1428 = vmul.f32 %v1396, %v1396
    %v1429 = vmul.f32 %v1397, %v1397
    %v1430 = vmul.f32 %v1398, %v1398
    %v1431 = vmul.f32 %v1399, %v1399
    %v1432 = vmul.f32 %v1400, %v1400
    %v1433 = vmul.f32 %v1401, %v1401
    %v1434 = vmul.f32 %v1402, %v1402
    %v1435 = vmul.f32 %v1403, %v1403
    %v1436 = vmul.f32 %v1404, %v1404
    %v1437 = vmul.f32 %v1405, %v1405
    %v1438 = vmul.f32 %v1406, %v1406
    %v1439 = vmul.f32 %v1407, %v1407
    %v1440 = vmul.f32 %v1408, %v1408
    %v1441 = vmul.f32 %v1409, %v1409
    %v1442 = vadd.f32 %v1410, %v1411
    %v1443 = vadd.f32 %v1442, %v1412
    %v1444 = vadd.f32 %v1443, %v1413
    %v1445 = vadd.f32 %v1444, %v1414
    %v1446 = vadd.f32 %v1445, %v1415
    %v1447 = vadd.f32 %v1446, %v1416
    %v1448 = vadd.f32 %v1447, %v1417
    %v1449 = vadd.f32 %v1448, %v1418
    %v1450 = vadd.f32 %v1449, %v1419
    %v1451 = vadd.f32 %v1450, %v1420
    %v1452 = vadd.f32 %v1451, %v1421
    %v1453 = vadd.f32 %v1452, %v1422
    %v1454 = vadd.f32 %v1453, %v1423
    %v1455 = vadd.f32 %v1454, %v1424
    %v1456 = vadd.f32 %v1455, %v1425
    %v1457 = vadd.f32 %v1456, %v1426
    %v1458 = vadd.f32 %v1457, %v1427
    %v1459 = vadd.f32 %v1458, %v1428
    %v1460 = vadd.f32 %v1459, %v1429
    %v1461 = vadd.f32 %v1460, %v1430
    %v1462 = vadd.f32 %v1461, %v1431
    %v1463 = vadd.f32 %v1462, %v1432
    %v1464 = vadd.f32 %v1463, %v1433
    %v1465 = vadd.f32 %v1464, %v1434
    %v1466 = vadd.f32 %v1465, %v1435
    %v1467 = vadd.f32 %v1466, %v1436
    %v1468 = vadd.f32 %v1467, %v1437
    %v1469 = vadd.f32 %v1468, %v1438
    %v1470 = vadd.f32 %v1469, %v1439
    %v1471 = vadd.f32 %v1470, %v1440
    %v1472 = vadd.f32 %v1471, %v1441
    %v1473 = vrot.slane %v1472, 4
    %v1474 = vadd.f32 %v1472, %v1473
    %v1475 = vrot.slane %v1474, 2
    %v1476 = vadd.f32 %v1474, %v1475
    %v1477 = vrot.slane %v1476, 1
    %v1478 = vadd.f32 %v1476, %v1477
    %v1479 = vmul.f32 %v1478, 0.00390625
    %v1480 = vadd.f32 %v1479, 1e-05
    %v1481 = vrsqrt.pop %v1480
    %v1482 = vmul.f32 %v1481, %v1480
    %v1483 = vmul.f32 %v1482, %v1481
    %v1484 = vmul.f32 0.5, %v1483
    %v1485 = vsub.f32 1.5, %v1484
    %v1486 = vmul.f32 %v1481, %v1485
    %vm1487 = vweird.f32 %v1480
    %vm1488 = vweird.f32 %v1481
    %vm1489 = vmor %vm1487, %vm1488
    %v1490 = vsel %vm1489, %v1481, %v1486
    %v1491 = vmul.f32 %v97, %v1490
    %v1492 = vperm.slane %v1491, 4
    %v1493 = vmul.f32 %v1378, %v1492
    %v1494 = vmul.f32 %v1379, %v1492
    %v1495 = vmul.f32 %v1380, %v1492
    %v1496 = vmul.f32 %v1381, %v1492
    %v1497 = vmul.f32 %v1382, %v1492
    %v1498 = vmul.f32 %v1383, %v1492
    %v1499 = vmul.f32 %v1384, %v1492
    %v1500 = vmul.f32 %v1385, %v1492
    %v1501 = vmul.f32 %v1386, %v1492
    %v1502 = vmul.f32 %v1387, %v1492
    %v1503 = vmul.f32 %v1388, %v1492
    %v1504 = vmul.f32 %v1389, %v1492
    %v1505 = vmul.f32 %v1390, %v1492
    %v1506 = vmul.f32 %v1391, %v1492
    %v1507 = vmul.f32 %v1392, %v1492
    %v1508 = vmul.f32 %v1393, %v1492
    %v1509 = vmul.f32 %v1394, %v1492
    %v1510 = vmul.f32 %v1395, %v1492
    %v1511 = vmul.f32 %v1396, %v1492
    %v1512 = vmul.f32 %v1397, %v1492
    %v1513 = vmul.f32 %v1398, %v1492
    %v1514 = vmul.f32 %v1399, %v1492
    %v1515 = vmul.f32 %v1400, %v1492
    %v1516 = vmul.f32 %v1401, %v1492
    %v1517 = vmul.f32 %v1402, %v1492
    %v1518 = vmul.f32 %v1403, %v1492
    %v1519 = vmul.f32 %v1404, %v1492
    %v1520 = vmul.f32 %v1405, %v1492
    %v1521 = vmul.f32 %v1406, %v1492
    %v1522 = vmul.f32 %v1407, %v1492
    %v1523 = vmul.f32 %v1408, %v1492
    %v1524 = vmul.f32 %v1409, %v1492
    %v1525 = vperm.slane %v97, 5
    %v1526 = vadd.f32 %v1493, %v1525
    %v1527 = vadd.f32 %v1494, %v1525
    %v1528 = vadd.f32 %v1495, %v1525
    %v1529 = vadd.f32 %v1496, %v1525
    %v1530 = vadd.f32 %v1497, %v1525
    %v1531 = vadd.f32 %v1498, %v1525
    %v1532 = vadd.f32 %v1499, %v1525
    %v1533 = vadd.f32 %v1500, %v1525
    %v1534 = vadd.f32 %v1501, %v1525
    %v1535 = vadd.f32 %v1502, %v1525
    %v1536 = vadd.f32 %v1503, %v1525
    %v1537 = vadd.f32 %v1504, %v1525
    %v1538 = vadd.f32 %v1505, %v1525
    %v1539 = vadd.f32 %v1506, %v1525
    %v1540 = vadd.f32 %v1507, %v1525
    %v1541 = vadd.f32 %v1508, %v1525
    %v1542 = vadd.f32 %v1509, %v1525
    %v1543 = vadd.f32 %v1510, %v1525
    %v1544 = vadd.f32 %v1511, %v1525
    %v1545 = vadd.f32 %v1512, %v1525
    %v1546 = vadd.f32 %v1513, %v1525
    %v1547 = vadd.f32 %v1514, %v1525
    %v1548 = vadd.f32 %v1515, %v1525
    %v1549 = vadd.f32 %v1516, %v1525
    %v1550 = vadd.f32 %v1517, %v1525
    %v1551 = vadd.f32 %v1518, %v1525
    %v1552 = vadd.f32 %v1519, %v1525
    %v1553 = vadd.f32 %v1520, %v1525
    %v1554 = vadd.f32 %v1521, %v1525
    %v1555 = vadd.f32 %v1522, %v1525
    %v1556 = vadd.f32 %v1523, %v1525
    %v1557 = vadd.f32 %v1524, %v1525
    %v1558 = vmax.f32 %v1526, 0.0
    %v1559 = vmax.f32 %v1527, 0.0
    %v1560 = vmax.f32 %v1528, 0.0
    %v1561 = vmax.f32 %v1529, 0.0
    %v1562 = vmax.f32 %v1530, 0.0
    %v1563 = vmax.f32 %v1531, 0.0
    %v1564 = vmax.f32 %v1532, 0.0
    %v1565 = vmax.f32 %v1533, 0.0
    %v1566 = vmax.f32 %v1534, 0.0
    %v1567 = vmax.f32 %v1535, 0.0
    %v1568 = vmax.f32 %v1536, 0.0
    %v1569 = vmax.f32 %v1537, 0.0
    %v1570 = vmax.f32 %v1538, 0.0
    %v1571 = vmax.f32 %v1539, 0.0
    %v1572 = vmax.f32 %v1540, 0.0
    %v1573 = vmax.f32 %v1541, 0.0
    %v1574 = vmax.f32 %v1542, 0.0
    %v1575 = vmax.f32 %v1543, 0.0
    %v1576 = vmax.f32 %v1544, 0.0
    %v1577 = vmax.f32 %v1545, 0.0
    %v1578 = vmax.f32 %v1546, 0.0
    %v1579 = vmax.f32 %v1547, 0.0
    %v1580 = vmax.f32 %v1548, 0.0
    %v1581 = vmax.f32 %v1549, 0.0
    %v1582 = vmax.f32 %v1550, 0.0
    %v1583 = vmax.f32 %v1551, 0.0
    %v1584 = vmax.f32 %v1552, 0.0
    %v1585 = vmax.f32 %v1553, 0.0
    %v1586 = vmax.f32 %v1554, 0.0
    %v1587 = vmax.f32 %v1555, 0.0
    %v1588 = vmax.f32 %v1556, 0.0
    %v1589 = vmax.f32 %v1557, 0.0
    %v1590 = vpack.c.bf16 %v1559, %v1558
    %v1591 = vpack.c.bf16 %v1561, %v1560
    %v1592 = vpack.c.bf16 %v1563, %v1562
    %v1593 = vpack.c.bf16 %v1565, %v1564
    %v1594 = vpack.c.bf16 %v1567, %v1566
    %v1595 = vpack.c.bf16 %v1569, %v1568
    %v1596 = vpack.c.bf16 %v1571, %v1570
    %v1597 = vpack.c.bf16 %v1573, %v1572
    %v1598 = vpack.c.bf16 %v1575, %v1574
    %v1599 = vpack.c.bf16 %v1577, %v1576
    %v1600 = vpack.c.bf16 %v1579, %v1578
    %v1601 = vpack.c.bf16 %v1581, %v1580
    %v1602 = vpack.c.bf16 %v1583, %v1582
    %v1603 = vpack.c.bf16 %v1585, %v1584
    %v1604 = vpack.c.bf16 %v1587, %v1586
    %v1605 = vpack.c.bf16 %v1589, %v1588
    %v1606 = vld [vmem:[#allocation8] sm:$0xff]
    %v1607 = vld [vmem:[#allocation8 + $0x8] sm:$0xff]
    %v1608 = vld [vmem:[#allocation8 + $0x10] sm:$0xff]
    %v1609 = vld [vmem:[#allocation8 + $0x18] sm:$0xff]
    %v1610 = vld [vmem:[#allocation8 + $0x20] sm:$0xff]
    %v1611 = vld [vmem:[#allocation8 + $0x28] sm:$0xff]
    %v1612 = vld [vmem:[#allocation8 + $0x30] sm:$0xff]
    %v1613 = vld [vmem:[#allocation8 + $0x38] sm:$0xff]
    %v1614 = vld [vmem:[#allocation8 + $0x40] sm:$0xff]
    %v1615 = vld [vmem:[#allocation8 + $0x48] sm:$0xff]
    %v1616 = vld [vmem:[#allocation8 + $0x50] sm:$0xff]
    %v1617 = vld [vmem:[#allocation8 + $0x58] sm:$0xff]
    %v1618 = vld [vmem:[#allocation8 + $0x60] sm:$0xff]
    %v1619 = vld [vmem:[#allocation8 + $0x68] sm:$0xff]
    %v1620 = vld [vmem:[#allocation8 + $0x70] sm:$0xff]
    %v1621 = vld [vmem:[#allocation8 + $0x78] sm:$0xff]
    %v1622 = vperm.slane %v97, 6
    %v1623 = vperm.slane %v98, 6
    %v1640 = vunpack.c.l.b16 %v1606
    %v1641 = vunpack.c.h.b16 %v1606
    %v1642 = vunpack.c.l.b16 %v1607
    %v1643 = vunpack.c.h.b16 %v1607
    %v1644 = vunpack.c.l.b16 %v1608
    %v1645 = vunpack.c.h.b16 %v1608
    %v1646 = vunpack.c.l.b16 %v1609
    %v1647 = vunpack.c.h.b16 %v1609
    %v1648 = vunpack.c.l.b16 %v1610
    %v1649 = vunpack.c.h.b16 %v1610
    %v1650 = vunpack.c.l.b16 %v1611
    %v1651 = vunpack.c.h.b16 %v1611
    %v1652 = vunpack.c.l.b16 %v1612
    %v1653 = vunpack.c.h.b16 %v1612
    %v1654 = vunpack.c.l.b16 %v1613
    %v1655 = vunpack.c.h.b16 %v1613
    %v1656 = vunpack.c.l.b16 %v1614
    %v1657 = vunpack.c.h.b16 %v1614
    %v1658 = vunpack.c.l.b16 %v1615
    %v1659 = vunpack.c.h.b16 %v1615
    %v1660 = vunpack.c.l.b16 %v1616
    %v1661 = vunpack.c.h.b16 %v1616
    %v1662 = vunpack.c.l.b16 %v1617
    %v1663 = vunpack.c.h.b16 %v1617
    %v1664 = vunpack.c.l.b16 %v1618
    %v1665 = vunpack.c.h.b16 %v1618
    %v1666 = vunpack.c.l.b16 %v1619
    %v1667 = vunpack.c.h.b16 %v1619
    %v1668 = vunpack.c.l.b16 %v1620
    %v1669 = vunpack.c.h.b16 %v1620
    %v1670 = vunpack.c.l.b16 %v1621
    %v1671 = vunpack.c.h.b16 %v1621
    %v1672 = vpack.c.b16 %v1642, %v1640
    %v1673 = vpack.c.b16 %v1643, %v1641
    %v1674 = vpack.c.b16 %v1646, %v1644
    %v1675 = vpack.c.b16 %v1647, %v1645
    %v1676 = vpack.c.b16 %v1650, %v1648
    %v1677 = vpack.c.b16 %v1651, %v1649
    %v1678 = vpack.c.b16 %v1654, %v1652
    %v1679 = vpack.c.b16 %v1655, %v1653
    %v1680 = vpack.c.b16 %v1658, %v1656
    %v1681 = vpack.c.b16 %v1659, %v1657
    %v1682 = vpack.c.b16 %v1662, %v1660
    %v1683 = vpack.c.b16 %v1663, %v1661
    %v1684 = vpack.c.b16 %v1666, %v1664
    %v1685 = vpack.c.b16 %v1667, %v1665
    %v1686 = vpack.c.b16 %v1670, %v1668
    %v1687 = vpack.c.b16 %v1671, %v1669
    %1704 = vmatpush.bf16.msra.mxu0 %v1686
    %1705 = vmatpush.bf16.msra.mxu0 %v1684
    %1706 = vmatpush.bf16.msra.mxu0 %v1682
    %1707 = vmatpush.bf16.msra.mxu0 %v1680
    %1708 = vmatpush.bf16.msra.mxu0 %v1678
    %1709 = vmatpush.bf16.msra.mxu0 %v1676
    %1710 = vmatpush.bf16.msra.mxu0 %v1674
    %1711 = vmatpush.bf16.msra.mxu0 %v1672
    %1712 = vmatmul.bf16.gmra.mxu0 %v1590
    %v1713 = vpop.f32.mrf.mxu0
    %v1714 = vadd.f32 %v1622, %v1713
    %v1715 = vpop.f32.mrf.mxu0
    %v1716 = vadd.f32 %v1622, %v1715
    %1717 = vmatmul.bf16.gmra.mxu0 %v1591
    %v1718 = vpop.f32.mrf.mxu0
    %v1719 = vadd.f32 %v1622, %v1718
    %v1720 = vpop.f32.mrf.mxu0
    %v1721 = vadd.f32 %v1622, %v1720
    %1722 = vmatmul.bf16.gmra.mxu0 %v1592
    %v1723 = vpop.f32.mrf.mxu0
    %v1724 = vadd.f32 %v1622, %v1723
    %v1725 = vpop.f32.mrf.mxu0
    %v1726 = vadd.f32 %v1622, %v1725
    %1727 = vmatmul.bf16.gmra.mxu0 %v1593
    %v1728 = vpop.f32.mrf.mxu0
    %v1729 = vadd.f32 %v1622, %v1728
    %v1730 = vpop.f32.mrf.mxu0
    %v1731 = vadd.f32 %v1622, %v1730
    %1732 = vmatmul.bf16.gmra.mxu0 %v1594
    %v1733 = vpop.f32.mrf.mxu0
    %v1734 = vadd.f32 %v1622, %v1733
    %v1735 = vpop.f32.mrf.mxu0
    %v1736 = vadd.f32 %v1622, %v1735
    %1737 = vmatmul.bf16.gmra.mxu0 %v1595
    %v1738 = vpop.f32.mrf.mxu0
    %v1739 = vadd.f32 %v1622, %v1738
    %v1740 = vpop.f32.mrf.mxu0
    %v1741 = vadd.f32 %v1622, %v1740
    %1742 = vmatmul.bf16.gmra.mxu0 %v1596
    %v1743 = vpop.f32.mrf.mxu0
    %v1744 = vadd.f32 %v1622, %v1743
    %v1745 = vpop.f32.mrf.mxu0
    %v1746 = vadd.f32 %v1622, %v1745
    %1747 = vmatmul.bf16.gmra.mxu0 %v1597
    %v1748 = vpop.f32.mrf.mxu0
    %v1749 = vadd.f32 %v1622, %v1748
    %v1750 = vpop.f32.mrf.mxu0
    %v1751 = vadd.f32 %v1622, %v1750
    %1752 = vmatmul.bf16.gmra.mxu0 %v1598
    %v1753 = vpop.f32.mrf.mxu0
    %v1754 = vadd.f32 %v1622, %v1753
    %v1755 = vpop.f32.mrf.mxu0
    %v1756 = vadd.f32 %v1622, %v1755
    %1757 = vmatmul.bf16.gmra.mxu0 %v1599
    %v1758 = vpop.f32.mrf.mxu0
    %v1759 = vadd.f32 %v1622, %v1758
    %v1760 = vpop.f32.mrf.mxu0
    %v1761 = vadd.f32 %v1622, %v1760
    %1762 = vmatmul.bf16.gmra.mxu0 %v1600
    %v1763 = vpop.f32.mrf.mxu0
    %v1764 = vadd.f32 %v1622, %v1763
    %v1765 = vpop.f32.mrf.mxu0
    %v1766 = vadd.f32 %v1622, %v1765
    %1767 = vmatmul.bf16.gmra.mxu0 %v1601
    %v1768 = vpop.f32.mrf.mxu0
    %v1769 = vadd.f32 %v1622, %v1768
    %v1770 = vpop.f32.mrf.mxu0
    %v1771 = vadd.f32 %v1622, %v1770
    %1772 = vmatmul.bf16.gmra.mxu0 %v1602
    %v1773 = vpop.f32.mrf.mxu0
    %v1774 = vadd.f32 %v1622, %v1773
    %v1775 = vpop.f32.mrf.mxu0
    %v1776 = vadd.f32 %v1622, %v1775
    %1777 = vmatmul.bf16.gmra.mxu0 %v1603
    %v1778 = vpop.f32.mrf.mxu0
    %v1779 = vadd.f32 %v1622, %v1778
    %v1780 = vpop.f32.mrf.mxu0
    %v1781 = vadd.f32 %v1622, %v1780
    %1782 = vmatmul.bf16.gmra.mxu0 %v1604
    %v1783 = vpop.f32.mrf.mxu0
    %v1784 = vadd.f32 %v1622, %v1783
    %v1785 = vpop.f32.mrf.mxu0
    %v1786 = vadd.f32 %v1622, %v1785
    %1787 = vmatmul.bf16.gmra.mxu0 %v1605
    %v1788 = vpop.f32.mrf.mxu0
    %v1789 = vadd.f32 %v1622, %v1788
    %v1790 = vpop.f32.mrf.mxu0
    %v1791 = vadd.f32 %v1622, %v1790
    %1792 = vdwg.mxu0
    %1793 = vmatpush.bf16.msra.mxu0 %v1687
    %1794 = vmatpush.bf16.msra.mxu0 %v1685
    %1795 = vmatpush.bf16.msra.mxu0 %v1683
    %1796 = vmatpush.bf16.msra.mxu0 %v1681
    %1797 = vmatpush.bf16.msra.mxu0 %v1679
    %1798 = vmatpush.bf16.msra.mxu0 %v1677
    %1799 = vmatpush.bf16.msra.mxu0 %v1675
    %1800 = vmatpush.bf16.msra.mxu0 %v1673
    %1801 = vmatmul.bf16.gmra.mxu0 %v1590
    %v1802 = vpop.f32.mrf.mxu0
    %v1803 = vadd.f32 %v1623, %v1802
    %v1804 = vpop.f32.mrf.mxu0
    %v1805 = vadd.f32 %v1623, %v1804
    %1806 = vmatmul.bf16.gmra.mxu0 %v1591
    %v1807 = vpop.f32.mrf.mxu0
    %v1808 = vadd.f32 %v1623, %v1807
    %v1809 = vpop.f32.mrf.mxu0
    %v1810 = vadd.f32 %v1623, %v1809
    %1811 = vmatmul.bf16.gmra.mxu0 %v1592
    %v1812 = vpop.f32.mrf.mxu0
    %v1813 = vadd.f32 %v1623, %v1812
    %v1814 = vpop.f32.mrf.mxu0
    %v1815 = vadd.f32 %v1623, %v1814
    %1816 = vmatmul.bf16.gmra.mxu0 %v1593
    %v1817 = vpop.f32.mrf.mxu0
    %v1818 = vadd.f32 %v1623, %v1817
    %v1819 = vpop.f32.mrf.mxu0
    %v1820 = vadd.f32 %v1623, %v1819
    %1821 = vmatmul.bf16.gmra.mxu0 %v1594
    %v1822 = vpop.f32.mrf.mxu0
    %v1823 = vadd.f32 %v1623, %v1822
    %v1824 = vpop.f32.mrf.mxu0
    %v1825 = vadd.f32 %v1623, %v1824
    %1826 = vmatmul.bf16.gmra.mxu0 %v1595
    %v1827 = vpop.f32.mrf.mxu0
    %v1828 = vadd.f32 %v1623, %v1827
    %v1829 = vpop.f32.mrf.mxu0
    %v1830 = vadd.f32 %v1623, %v1829
    %1831 = vmatmul.bf16.gmra.mxu0 %v1596
    %v1832 = vpop.f32.mrf.mxu0
    %v1833 = vadd.f32 %v1623, %v1832
    %v1834 = vpop.f32.mrf.mxu0
    %v1835 = vadd.f32 %v1623, %v1834
    %1836 = vmatmul.bf16.gmra.mxu0 %v1597
    %v1837 = vpop.f32.mrf.mxu0
    %v1838 = vadd.f32 %v1623, %v1837
    %v1839 = vpop.f32.mrf.mxu0
    %v1840 = vadd.f32 %v1623, %v1839
    %1841 = vmatmul.bf16.gmra.mxu0 %v1598
    %v1842 = vpop.f32.mrf.mxu0
    %v1843 = vadd.f32 %v1623, %v1842
    %v1844 = vpop.f32.mrf.mxu0
    %v1845 = vadd.f32 %v1623, %v1844
    %1846 = vmatmul.bf16.gmra.mxu0 %v1599
    %v1847 = vpop.f32.mrf.mxu0
    %v1848 = vadd.f32 %v1623, %v1847
    %v1849 = vpop.f32.mrf.mxu0
    %v1850 = vadd.f32 %v1623, %v1849
    %1851 = vmatmul.bf16.gmra.mxu0 %v1600
    %v1852 = vpop.f32.mrf.mxu0
    %v1853 = vadd.f32 %v1623, %v1852
    %v1854 = vpop.f32.mrf.mxu0
    %v1855 = vadd.f32 %v1623, %v1854
    %1856 = vmatmul.bf16.gmra.mxu0 %v1601
    %v1857 = vpop.f32.mrf.mxu0
    %v1858 = vadd.f32 %v1623, %v1857
    %v1859 = vpop.f32.mrf.mxu0
    %v1860 = vadd.f32 %v1623, %v1859
    %1861 = vmatmul.bf16.gmra.mxu0 %v1602
    %v1862 = vpop.f32.mrf.mxu0
    %v1863 = vadd.f32 %v1623, %v1862
    %v1864 = vpop.f32.mrf.mxu0
    %v1865 = vadd.f32 %v1623, %v1864
    %1866 = vmatmul.bf16.gmra.mxu0 %v1603
    %v1867 = vpop.f32.mrf.mxu0
    %v1868 = vadd.f32 %v1623, %v1867
    %v1869 = vpop.f32.mrf.mxu0
    %v1870 = vadd.f32 %v1623, %v1869
    %1871 = vmatmul.bf16.gmra.mxu0 %v1604
    %v1872 = vpop.f32.mrf.mxu0
    %v1873 = vadd.f32 %v1623, %v1872
    %v1874 = vpop.f32.mrf.mxu0
    %v1875 = vadd.f32 %v1623, %v1874
    %1876 = vmatmul.bf16.gmra.mxu0 %v1605
    %v1877 = vpop.f32.mrf.mxu0
    %v1878 = vadd.f32 %v1623, %v1877
    %v1879 = vpop.f32.mrf.mxu0
    %v1880 = vadd.f32 %v1623, %v1879
    %1881 = vdwg.mxu0
    %v1882 = vtanh.pop %v1714
    %v1883 = vtanh.pop %v1803
    %v1884 = vtanh.pop %v1716
    %v1885 = vtanh.pop %v1805
    %v1886 = vtanh.pop %v1719
    %v1887 = vtanh.pop %v1808
    %v1888 = vtanh.pop %v1721
    %v1889 = vtanh.pop %v1810
    %v1890 = vtanh.pop %v1724
    %v1891 = vtanh.pop %v1813
    %v1892 = vtanh.pop %v1726
    %v1893 = vtanh.pop %v1815
    %v1894 = vtanh.pop %v1729
    %v1895 = vtanh.pop %v1818
    %v1896 = vtanh.pop %v1731
    %v1897 = vtanh.pop %v1820
    %v1898 = vtanh.pop %v1734
    %v1899 = vtanh.pop %v1823
    %v1900 = vtanh.pop %v1736
    %v1901 = vtanh.pop %v1825
    %v1902 = vtanh.pop %v1739
    %v1903 = vtanh.pop %v1828
    %v1904 = vtanh.pop %v1741
    %v1905 = vtanh.pop %v1830
    %v1906 = vtanh.pop %v1744
    %v1907 = vtanh.pop %v1833
    %v1908 = vtanh.pop %v1746
    %v1909 = vtanh.pop %v1835
    %v1910 = vtanh.pop %v1749
    %v1911 = vtanh.pop %v1838
    %v1912 = vtanh.pop %v1751
    %v1913 = vtanh.pop %v1840
    %v1914 = vtanh.pop %v1754
    %v1915 = vtanh.pop %v1843
    %v1916 = vtanh.pop %v1756
    %v1917 = vtanh.pop %v1845
    %v1918 = vtanh.pop %v1759
    %v1919 = vtanh.pop %v1848
    %v1920 = vtanh.pop %v1761
    %v1921 = vtanh.pop %v1850
    %v1922 = vtanh.pop %v1764
    %v1923 = vtanh.pop %v1853
    %v1924 = vtanh.pop %v1766
    %v1925 = vtanh.pop %v1855
    %v1926 = vtanh.pop %v1769
    %v1927 = vtanh.pop %v1858
    %v1928 = vtanh.pop %v1771
    %v1929 = vtanh.pop %v1860
    %v1930 = vtanh.pop %v1774
    %v1931 = vtanh.pop %v1863
    %v1932 = vtanh.pop %v1776
    %v1933 = vtanh.pop %v1865
    %v1934 = vtanh.pop %v1779
    %v1935 = vtanh.pop %v1868
    %v1936 = vtanh.pop %v1781
    %v1937 = vtanh.pop %v1870
    %v1938 = vtanh.pop %v1784
    %v1939 = vtanh.pop %v1873
    %v1940 = vtanh.pop %v1786
    %v1941 = vtanh.pop %v1875
    %v1942 = vtanh.pop %v1789
    %v1943 = vtanh.pop %v1878
    %v1944 = vtanh.pop %v1791
    %v1945 = vtanh.pop %v1880
    %1946 = vst [vmem:[#allocation11] sm:$0xff] %v1882
    %1947 = vst [vmem:[#allocation11 + $0x8] sm:$0xff] %v1883
    %1948 = vst [vmem:[#allocation11 + $0x10] sm:$0xff] %v1884
    %1949 = vst [vmem:[#allocation11 + $0x18] sm:$0xff] %v1885
    %1950 = vst [vmem:[#allocation11 + $0x20] sm:$0xff] %v1886
    %1951 = vst [vmem:[#allocation11 + $0x28] sm:$0xff] %v1887
    %1952 = vst [vmem:[#allocation11 + $0x30] sm:$0xff] %v1888
    %1953 = vst [vmem:[#allocation11 + $0x38] sm:$0xff] %v1889
    %1954 = vst [vmem:[#allocation11 + $0x40] sm:$0xff] %v1890
    %1955 = vst [vmem:[#allocation11 + $0x48] sm:$0xff] %v1891
    %1956 = vst [vmem:[#allocation11 + $0x50] sm:$0xff] %v1892
    %1957 = vst [vmem:[#allocation11 + $0x58] sm:$0xff] %v1893
    %1958 = vst [vmem:[#allocation11 + $0x60] sm:$0xff] %v1894
    %1959 = vst [vmem:[#allocation11 + $0x68] sm:$0xff] %v1895
    %1960 = vst [vmem:[#allocation11 + $0x70] sm:$0xff] %v1896
    %1961 = vst [vmem:[#allocation11 + $0x78] sm:$0xff] %v1897
    %1962 = vst [vmem:[#allocation11 + $0x80] sm:$0xff] %v1898
    %1963 = vst [vmem:[#allocation11 + $0x88] sm:$0xff] %v1899
    %1964 = vst [vmem:[#allocation11 + $0x90] sm:$0xff] %v1900
    %1965 = vst [vmem:[#allocation11 + $0x98] sm:$0xff] %v1901
    %1966 = vst [vmem:[#allocation11 + $0xa0] sm:$0xff] %v1902
    %1967 = vst [vmem:[#allocation11 + $0xa8] sm:$0xff] %v1903
    %1968 = vst [vmem:[#allocation11 + $0xb0] sm:$0xff] %v1904
    %1969 = vst [vmem:[#allocation11 + $0xb8] sm:$0xff] %v1905
    %1970 = vst [vmem:[#allocation11 + $0xc0] sm:$0xff] %v1906
    %1971 = vst [vmem:[#allocation11 + $0xc8] sm:$0xff] %v1907
    %1972 = vst [vmem:[#allocation11 + $0xd0] sm:$0xff] %v1908
    %1973 = vst [vmem:[#allocation11 + $0xd8] sm:$0xff] %v1909
    %1974 = vst [vmem:[#allocation11 + $0xe0] sm:$0xff] %v1910
    %1975 = vst [vmem:[#allocation11 + $0xe8] sm:$0xff] %v1911
    %1976 = vst [vmem:[#allocation11 + $0xf0] sm:$0xff] %v1912
    %1977 = vst [vmem:[#allocation11 + $0xf8] sm:$0xff] %v1913
    %1978 = vst [vmem:[#allocation11 + $0x100] sm:$0xff] %v1914
    %1979 = vst [vmem:[#allocation11 + $0x108] sm:$0xff] %v1915
    %1980 = vst [vmem:[#allocation11 + $0x110] sm:$0xff] %v1916
    %1981 = vst [vmem:[#allocation11 + $0x118] sm:$0xff] %v1917
    %1982 = vst [vmem:[#allocation11 + $0x120] sm:$0xff] %v1918
    %1983 = vst [vmem:[#allocation11 + $0x128] sm:$0xff] %v1919
    %1984 = vst [vmem:[#allocation11 + $0x130] sm:$0xff] %v1920
    %1985 = vst [vmem:[#allocation11 + $0x138] sm:$0xff] %v1921
    %1986 = vst [vmem:[#allocation11 + $0x140] sm:$0xff] %v1922
    %1987 = vst [vmem:[#allocation11 + $0x148] sm:$0xff] %v1923
    %1988 = vst [vmem:[#allocation11 + $0x150] sm:$0xff] %v1924
    %1989 = vst [vmem:[#allocation11 + $0x158] sm:$0xff] %v1925
    %1990 = vst [vmem:[#allocation11 + $0x160] sm:$0xff] %v1926
    %1991 = vst [vmem:[#allocation11 + $0x168] sm:$0xff] %v1927
    %1992 = vst [vmem:[#allocation11 + $0x170] sm:$0xff] %v1928
    %1993 = vst [vmem:[#allocation11 + $0x178] sm:$0xff] %v1929
    %1994 = vst [vmem:[#allocation11 + $0x180] sm:$0xff] %v1930
    %1995 = vst [vmem:[#allocation11 + $0x188] sm:$0xff] %v1931
    %1996 = vst [vmem:[#allocation11 + $0x190] sm:$0xff] %v1932
    %1997 = vst [vmem:[#allocation11 + $0x198] sm:$0xff] %v1933
    %1998 = vst [vmem:[#allocation11 + $0x1a0] sm:$0xff] %v1934
    %1999 = vst [vmem:[#allocation11 + $0x1a8] sm:$0xff] %v1935
    %2000 = vst [vmem:[#allocation11 + $0x1b0] sm:$0xff] %v1936
    %2001 = vst [vmem:[#allocation11 + $0x1b8] sm:$0xff] %v1937
    %2002 = vst [vmem:[#allocation11 + $0x1c0] sm:$0xff] %v1938
    %2003 = vst [vmem:[#allocation11 + $0x1c8] sm:$0xff] %v1939
    %2004 = vst [vmem:[#allocation11 + $0x1d0] sm:$0xff] %v1940
    %2005 = vst [vmem:[#allocation11 + $0x1d8] sm:$0xff] %v1941
    %2006 = vst [vmem:[#allocation11 + $0x1e0] sm:$0xff] %v1942
    %2007 = vst [vmem:[#allocation11 + $0x1e8] sm:$0xff] %v1943
    %2008 = vst [vmem:[#allocation11 + $0x1f0] sm:$0xff] %v1944
    %2009 = vst [vmem:[#allocation11 + $0x1f8] sm:$0xff] %v1945
    // Predicated region
    $region42: #{tpu_custom_call.1} parent=1 // pred_check
      _
    $region43: #{tpu_custom_call.1} parent=1 // pred_check_branch
      %2011 = sbr.rel (0) target = $region45
    $region44: #{tpu_custom_call.1} parent=1 // pred_region
      %2013 = vsyncadd [#allocation4], 0
      %s2014 = sshll.u32 [#allocation11], 4
      %s2015 = int_to_ptr.vmem [resolvable:$true] %s2014
      %s2016 = sshll.u32 %s5, 4
      %s2017 = int_to_ptr.hbm [resolvable:$true] %s2016
      %2022 = dma.vmem_to_hbm [thread:$0]  %s2015, 8192, %s2017, [#allocation4], 256, 256, 16
    $region45: #{tpu_custom_call.1} parent=1 // pred_fallthru
      _
    // Predicated region
    $region46: #{tpu_custom_call.1} parent=1 // pred_check
      _
    $region47: #{tpu_custom_call.1} parent=1 // pred_check_branch
      %2024 = sbr.rel (0) target = $region49
    $region48: #{tpu_custom_call.1} parent=1 // pred_region
      %2026 = dma.done [#allocation4], 8192
    $region49: #{tpu_custom_call.1} parent=1 // pred_fallthru
      _
    %2027 = vsyncpa [#allocation3], 1
    %2028 = vsyncpa [#allocation6], 1
    %2029 = vsyncpa [#allocation9], 1
    %2030 = vsyncpa [#allocation4], 1

</llo_original>
